<compile_context>
chip_gen: v6e
topology: v6e:2x2x1
jax: 0.10.0
libtpu: 0.0.40
codegen_flags: <defaults>
</compile_context>

<pallas_src>
from functools import partial

import numpy as np
import jax
import jax.numpy as jnp
from jax import lax
from jax.experimental import pallas as pl
from jax.experimental.pallas import tpu as pltpu


# ---------------------------------------------------------------------------
# Kernels
# ---------------------------------------------------------------------------

def _ddim_kernel_final(m_ref, b_ref, x_in_ref, x_out_ref):
    """Full DDIM loop in one invocation; returns only the clipped final state.

    m_ref    : SMEM f32[n_steps, C*C]  folded per-step update matrix ([co, ci] row-major)
    b_ref    : SMEM f32[n_steps, C]    folded per-step bias
    x_in_ref : VMEM f32[C, Mt, 128]    x_T tile (channel-major, lane-dense)
    x_out_ref: VMEM f32[C, Mt, 128]    clipped x_0 tile
    """
    n_steps = m_ref.shape[0]
    C = x_in_ref.shape[0]

    def step(s, slabs):
        new = []
        for co in range(C):
            r = m_ref[s, co * C] * slabs[0]
            for ci in range(1, C):
                r = r + m_ref[s, co * C + ci] * slabs[ci]
            new.append(r + b_ref[s, co])
        return tuple(new)

    slabs = tuple(x_in_ref[c] for c in range(C))
    slabs = lax.fori_loop(0, n_steps, step, slabs, unroll=bool(n_steps <= 32))
    for c in range(C):
        x_out_ref[c] = jnp.clip(slabs[c], -1.0, 1.0)


def _ddim_kernel_snaps(m_ref, b_ref, slot_ref, x_in_ref, snap_ref):
    """Full DDIM loop; emits clipped snapshots for kept steps only.

    slot_ref : SMEM i32[n_steps]  compact snapshot slot per step, -1 = skip
    snap_ref : VMEM f32[n_kept, C, Mt, 128]
    """
    n_steps = m_ref.shape[0]
    C = x_in_ref.shape[0]

    def step(s, slabs):
        new = []
        for co in range(C):
            r = m_ref[s, co * C] * slabs[0]
            for ci in range(1, C):
                r = r + m_ref[s, co * C + ci] * slabs[ci]
            new.append(r + b_ref[s, co])

        slot = slot_ref[s]

        @pl.when(slot >= 0)
        def _():
            snap_ref[slot] = jnp.stack(
                [jnp.clip(v, -1.0, 1.0) for v in new], axis=0)

        return tuple(new)

    slabs = tuple(x_in_ref[c] for c in range(C))
    lax.fori_loop(0, n_steps, step, slabs, unroll=bool(n_steps <= 32))


# ---------------------------------------------------------------------------
# Layout helpers (run inside jit; all shape math is static)
# ---------------------------------------------------------------------------

def _pick_m_tile(M, C, n_snap):
    """Largest multiple-of-8 divisor of M keeping resident blocks under ~8 MiB."""
    budget = 8 * 1024 * 1024
    bytes_per_row = (n_snap + 4) * C * 128 * 4   # snap slots + in/out double buffers
    cap = max(8, budget // max(bytes_per_row, 1))
    if M <= cap or M % 8 != 0:
        return M
    cap -= cap % 8
    for mt in range(cap, 7, -8):
        if M % mt == 0:
            return mt
    return M


def _to_lane_layout(x_T):
    """NCHW -> channel-major lane-dense [C, M, 128] (pad N up to a multiple of 128)."""
    B, C, H, W = x_T.shape
    N = B * H * W
    M = (N + 127) // 128
    Np = M * 128
    x2 = jnp.transpose(x_T.astype(jnp.float32), (1, 0, 2, 3)).reshape(C, N)
    if Np != N:
        x2 = jnp.pad(x2, ((0, 0), (0, Np - N)))
    return x2.reshape(C, M, 128), M


def _from_lane_layout(x3, shape):
    B, C, H, W = shape
    N = B * H * W
    x2 = x3.reshape(C, -1)[:, :N]
    return jnp.transpose(x2.reshape(C, B, H, W), (1, 0, 2, 3))


# ---------------------------------------------------------------------------
# Jitted cores
# ---------------------------------------------------------------------------

@jax.jit
def _ddim_core_final(x_T, m_tab, b_tab):
    B, C, H, W = x_T.shape
    x3, M = _to_lane_layout(x_T)
    Mt = _pick_m_tile(M, C, 0)
    grid = (M // Mt,)

    x_fin = pl.pallas_call(
        _ddim_kernel_final,
        out_shape=jax.ShapeDtypeStruct((C, M, 128), jnp.float32),
        grid=grid,
        in_specs=[
            pl.BlockSpec(memory_space=pltpu.MemorySpace.SMEM),   # m_tab
            pl.BlockSpec(memory_space=pltpu.MemorySpace.SMEM),   # b_tab
            pl.BlockSpec((C, Mt, 128), lambda n: (0, n, 0)),     # x_T tile
        ],
        out_specs=pl.BlockSpec((C, Mt, 128), lambda n: (0, n, 0)),
        input_output_aliases={2: 0},                             # reuse x_T buffer for x_0
        compiler_params=pltpu.CompilerParams(
            dimension_semantics=("parallel",)),
    )(m_tab, b_tab, x3)

    return _from_lane_layout(x_fin, (B, C, H, W))


@partial(jax.jit, static_argnames=("n_kept",))
def _ddim_core_snaps(x_T, m_tab, b_tab, slot_tab, *, n_kept):
    B, C, H, W = x_T.shape
    N = B * H * W
    x3, M = _to_lane_layout(x_T)
    Mt = _pick_m_tile(M, C, n_kept)
    grid = (M // Mt,)

    snaps = pl.pallas_call(
        _ddim_kernel_snaps,
        out_shape=jax.ShapeDtypeStruct((n_kept, C, M, 128), jnp.float32),
        grid=grid,
        in_specs=[
            pl.BlockSpec(memory_space=pltpu.MemorySpace.SMEM),       # m_tab
            pl.BlockSpec(memory_space=pltpu.MemorySpace.SMEM),       # b_tab
            pl.BlockSpec(memory_space=pltpu.MemorySpace.SMEM),       # slot_tab
            pl.BlockSpec((C, Mt, 128), lambda n: (0, n, 0)),         # x_T tile
        ],
        out_specs=pl.BlockSpec((n_kept, C, Mt, 128), lambda n: (0, 0, n, 0)),
        compiler_params=pltpu.CompilerParams(
            dimension_semantics=("parallel",)),
    )(m_tab, b_tab, slot_tab, x3)

    snaps = snaps.reshape(n_kept, C, M * 128)[:, :, :N]
    snaps = jnp.transpose(snaps.reshape(n_kept, C, B, H, W), (0, 2, 1, 3, 4))
    return snaps


# ---------------------------------------------------------------------------
# Sampler
# ---------------------------------------------------------------------------

def timestep_embedding(t, dim):
    half = dim // 2
    freqs = np.exp(-np.log(10000.0) * np.arange(half, dtype=np.float64) / half)
    args = float(t) * freqs
    return np.concatenate([np.sin(args), np.cos(args)]).astype(np.float32)    # [dim]


class DDIMSamplerPallas:
    """JAX/Pallas port of DDIMSampler with a small synthetic eps-model."""

    def __init__(self, beta_1, beta_T, T, C, key, temb_dim=32):
        self.T = T
        self.C = C
        self.temb_dim = temb_dim
        # buffers (kept in float64 like the PyTorch .double() buffers)
        betas = np.linspace(beta_1, beta_T, T, dtype=np.float64)
        alphas = 1.0 - betas
        self.alphas_bar = np.cumprod(alphas, axis=0)
        # deterministic synthetic model parameters
        k1, k2, k3 = jax.random.split(key, 3)
        self.w = (0.1 * jax.random.normal(k1, (C, C))).astype(jnp.float32)
        self.temb_w = (0.1 * jax.random.normal(k2, (temb_dim, 2 * C))).astype(jnp.float32)
        self.temb_b = (0.01 * jax.random.normal(k3, (2 * C,))).astype(jnp.float32)

    def _schedule(self, ddim_timesteps, eta):
        """Fold eps-model + DDIM update into per-step affine tables (float64 on host)."""
        times = np.linspace(-1, self.T - 1, num=ddim_timesteps + 1)
        times = list(reversed(times.astype(np.int64).tolist()))   # trunc toward 0 like .int()
        time_pairs = list(zip(times[:-1], times[1:]))
        n_steps = len(time_pairs)
        C = self.C

        w64 = np.asarray(self.w, dtype=np.float64)                # [C, C]
        temb_w64 = np.asarray(self.temb_w, dtype=np.float64)
        temb_b64 = np.asarray(self.temb_b, dtype=np.float64)
        eye = np.eye(C, dtype=np.float64)

        m_tab = np.empty((n_steps, C * C), dtype=np.float64)
        b_tab = np.empty((n_steps, C), dtype=np.float64)
        for i, (t, t_next) in enumerate(time_pairs):
            ab_t = float(self.alphas_bar[t])
            # NOTE: t_next == -1 on the final step; negative indexing wraps to
            # alphas_bar[T-1], replicating the reference's gather-at--1 behavior
            # (not the alpha_bar(0)~=1 boundary, preserved intentionally).
            ab_next = float(self.alphas_bar[t_next])
            if eta > 0:
                sigma = eta * np.sqrt((1.0 - ab_next) / (1.0 - ab_t) * (1.0 - ab_t / ab_next))
            else:
                sigma = 0.0
            a = np.sqrt(ab_next / ab_t)
            e = (np.sqrt(1.0 - ab_next - sigma ** 2)
                 - np.sqrt(ab_next * (1.0 - ab_t) / ab_t))
            emb = timestep_embedding(t, self.temb_dim).astype(np.float64)
            gb = emb @ temb_w64 + temb_b64
            gamma, beta = gb[:C], gb[C:]
            w_mod = (1.0 + gamma)[:, None] * w64.T                # [co, ci]
            m_tab[i] = (a * eye + e * w_mod).reshape(-1)
            b_tab[i] = e * beta

        return (jnp.asarray(m_tab.astype(np.float32)),
                jnp.asarray(b_tab.astype(np.float32)),
                time_pairs)

    def __call__(self, x_T, ddim_timesteps, eta=0.0, multi_steps=False):
        # TODO(synk): eta > 0 stochastic sigma_t * randn_like noise term not added.
        m_tab, b_tab, time_pairs = self._schedule(ddim_timesteps, eta)

        if not multi_steps:
            return _ddim_core_final(x_T, m_tab, b_tab)

        # Compact snapshot slots for steps passing the reference filter.
        slots, kept = [], 0
        for (_, t_next) in time_pairs:
            if t_next < 100 or t_next % 10 == 0:
                slots.append(kept)
                kept += 1
            else:
                slots.append(-1)
        if kept == 0:
            return []
        slot_tab = jnp.asarray(np.asarray(slots, dtype=np.int32))
        snaps = _ddim_core_snaps(x_T, m_tab, b_tab, slot_tab, n_kept=kept)
        return [snaps[i] for i in range(kept)]


# ---------------------------------------------------------------------------
# Reference (float64 numpy port of the original per-step DDIM formulas)
# ---------------------------------------------------------------------------

def _reference_numpy(sampler, x_T, ddim_timesteps, eta=0.0):
    x = np.asarray(x_T, dtype=np.float64)
    B, C, H, W = x.shape
    w = np.asarray(sampler.w, dtype=np.float64)
    temb_w = np.asarray(sampler.temb_w, dtype=np.float64)
    temb_b = np.asarray(sampler.temb_b, dtype=np.float64)

    times = np.linspace(-1, sampler.T - 1, num=ddim_timesteps + 1)
    times = list(reversed(times.astype(np.int64).tolist()))
    for t, t_next in zip(times[:-1], times[1:]):
        ab_t = sampler.alphas_bar[t]
        ab_next = sampler.alphas_bar[t_next]
        emb = timestep_embedding(t, sampler.temb_dim).astype(np.float64)
        gb = emb @ temb_w + temb_b
        gamma, beta = gb[:C], gb[C:]
        x2 = np.transpose(x, (0, 2, 3, 1)).reshape(-1, C)            # [N, C]
        eps2 = (x2 @ w) * (1.0 + gamma) + beta
        eps = np.transpose(eps2.reshape(B, H, W, C), (0, 3, 1, 2))   # NCHW
        sigma = (eta * np.sqrt((1 - ab_next) / (1 - ab_t) * (1 - ab_t / ab_next))
                 if eta > 0 else 0.0)
        pred_x0 = (x - np.sqrt(1.0 - ab_t) * eps) / np.sqrt(ab_t)
        x = np.sqrt(ab_next) * pred_x0 + np.sqrt(1.0 - ab_next - sigma ** 2) * eps
    return np.clip(x, -1.0, 1.0)


if __name__ == "__main__":
    key = jax.random.PRNGKey(0)
    k_model, k_x = jax.random.split(key)

    B, C, H, W = 2, 4, 16, 16
    T = 100
    sampler = DDIMSamplerPallas(beta_1=1e-4, beta_T=0.02, T=T, C=C, key=k_model)

    x_T = jax.random.normal(k_x, (B, C, H, W), dtype=jnp.float32)

    # multi_steps=False path: single output, fully VMEM-resident loop
    out = sampler(x_T, ddim_timesteps=8, eta=0.0, multi_steps=False)
    out = jax.block_until_ready(out)
    assert out.shape == (B, C, H, W), out.shape
    assert bool(jnp.all(out <= 1.0)) and bool(jnp.all(out >= -1.0))

    # correctness vs. a float64 numpy port of the reference formulas
    ref = _reference_numpy(sampler, np.asarray(x_T), ddim_timesteps=8, eta=0.0)
    np.testing.assert_allclose(np.asarray(out), ref, atol=5e-3, rtol=0.0)

    # multi_steps=True path: compact clipped snapshots from the fused kernel
    res_list = sampler(x_T, ddim_timesteps=8, eta=0.0, multi_steps=True)
    res_list = jax.block_until_ready(res_list)
    assert len(res_list) == 8 and res_list[0].shape == (B, C, H, W)
    # last kept snapshot equals the clipped final state
    np.testing.assert_allclose(np.asarray(res_list[-1]), ref, atol=5e-3, rtol=0.0)

    print("KERNEL_OK")
</pallas_src>

<mosaic_0001>
module attributes {stable_mosaic.version = 11 : i64} {
  func.func @_ddim_kernel_final(%arg0: i32, %arg1: memref<8x16xf32, #tpu.memory_space<smem>>, %arg2: memref<8x4xf32, #tpu.memory_space<smem>>, %arg3: memref<4x4x128xf32, #tpu.memory_space<vmem>>, %arg4: memref<4x4x128xf32, #tpu.memory_space<vmem>>) attributes {dimension_semantics = [#tpu.dimension_semantics<parallel>], iteration_bounds = array<i64: 1>, scalar_prefetch = 0 : i64, scratch_operands = 0 : i64, tpu.core_type = #tpu.core_type<tc>, window_params = [{transform_indices = @transform_0, window_bounds = array<i64: 8, 16>}, {transform_indices = @transform_1, window_bounds = array<i64: 8, 4>}, {transform_indices = @transform_2, window_bounds = array<i64: 4, 4, 128>}, {transform_indices = @transform_3, window_bounds = array<i64: 4, 4, 128>}]} {
    %c0 = arith.constant 0 : index
    %c0_0 = arith.constant 0 : index
    %c0_1 = arith.constant 0 : index
    %0 = vector.load %arg3[%c0, %c0_0, %c0_1] : memref<4x4x128xf32, #tpu.memory_space<vmem>>, vector<1x4x128xf32>
    %1 = vector.shape_cast %0 : vector<1x4x128xf32> to vector<4x128xf32>
    %c1 = arith.constant 1 : index
    %c0_2 = arith.constant 0 : index
    %c0_3 = arith.constant 0 : index
    %2 = vector.load %arg3[%c1, %c0_2, %c0_3] : memref<4x4x128xf32, #tpu.memory_space<vmem>>, vector<1x4x128xf32>
    %3 = vector.shape_cast %2 : vector<1x4x128xf32> to vector<4x128xf32>
    %c2 = arith.constant 2 : index
    %c0_4 = arith.constant 0 : index
    %c0_5 = arith.constant 0 : index
    %4 = vector.load %arg3[%c2, %c0_4, %c0_5] : memref<4x4x128xf32, #tpu.memory_space<vmem>>, vector<1x4x128xf32>
    %5 = vector.shape_cast %4 : vector<1x4x128xf32> to vector<4x128xf32>
    %c3 = arith.constant 3 : index
    %c0_6 = arith.constant 0 : index
    %c0_7 = arith.constant 0 : index
    %6 = vector.load %arg3[%c3, %c0_6, %c0_7] : memref<4x4x128xf32, #tpu.memory_space<vmem>>, vector<1x4x128xf32>
    %7 = vector.shape_cast %6 : vector<1x4x128xf32> to vector<4x128xf32>
    %c0_i32 = arith.constant 0 : i32
    %8 = arith.index_cast %c0_i32 : i32 to index
    %c0_8 = arith.constant 0 : index
    %9 = memref.load %arg1[%8, %c0_8] : memref<8x16xf32, #tpu.memory_space<smem>>
    %10 = vector.broadcast %9 : f32 to vector<4x128xf32>
    %11 = arith.mulf %10, %1 : vector<4x128xf32>
    %12 = arith.index_cast %c0_i32 : i32 to index
    %c1_9 = arith.constant 1 : index
    %13 = memref.load %arg1[%12, %c1_9] : memref<8x16xf32, #tpu.memory_space<smem>>
    %14 = vector.broadcast %13 : f32 to vector<4x128xf32>
    %15 = arith.mulf %14, %3 : vector<4x128xf32>
    %16 = arith.addf %11, %15 : vector<4x128xf32>
    %17 = arith.index_cast %c0_i32 : i32 to index
    %c2_10 = arith.constant 2 : index
    %18 = memref.load %arg1[%17, %c2_10] : memref<8x16xf32, #tpu.memory_space<smem>>
    %19 = vector.broadcast %18 : f32 to vector<4x128xf32>
    %20 = arith.mulf %19, %5 : vector<4x128xf32>
    %21 = arith.addf %16, %20 : vector<4x128xf32>
    %22 = arith.index_cast %c0_i32 : i32 to index
    %c3_11 = arith.constant 3 : index
    %23 = memref.load %arg1[%22, %c3_11] : memref<8x16xf32, #tpu.memory_space<smem>>
    %24 = vector.broadcast %23 : f32 to vector<4x128xf32>
    %25 = arith.mulf %24, %7 : vector<4x128xf32>
    %26 = arith.addf %21, %25 : vector<4x128xf32>
    %27 = arith.index_cast %c0_i32 : i32 to index
    %c0_12 = arith.constant 0 : index
    %28 = memref.load %arg2[%27, %c0_12] : memref<8x4xf32, #tpu.memory_space<smem>>
    %29 = vector.broadcast %28 : f32 to vector<4x128xf32>
    %30 = arith.addf %26, %29 : vector<4x128xf32>
    %31 = arith.index_cast %c0_i32 : i32 to index
    %c4 = arith.constant 4 : index
    %32 = memref.load %arg1[%31, %c4] : memref<8x16xf32, #tpu.memory_space<smem>>
    %33 = vector.broadcast %32 : f32 to vector<4x128xf32>
    %34 = arith.mulf %33, %1 : vector<4x128xf32>
    %35 = arith.index_cast %c0_i32 : i32 to index
    %c5 = arith.constant 5 : index
    %36 = memref.load %arg1[%35, %c5] : memref<8x16xf32, #tpu.memory_space<smem>>
    %37 = vector.broadcast %36 : f32 to vector<4x128xf32>
    %38 = arith.mulf %37, %3 : vector<4x128xf32>
    %39 = arith.addf %34, %38 : vector<4x128xf32>
    %40 = arith.index_cast %c0_i32 : i32 to index
    %c6 = arith.constant 6 : index
    %41 = memref.load %arg1[%40, %c6] : memref<8x16xf32, #tpu.memory_space<smem>>
    %42 = vector.broadcast %41 : f32 to vector<4x128xf32>
    %43 = arith.mulf %42, %5 : vector<4x128xf32>
    %44 = arith.addf %39, %43 : vector<4x128xf32>
    %45 = arith.index_cast %c0_i32 : i32 to index
    %c7 = arith.constant 7 : index
    %46 = memref.load %arg1[%45, %c7] : memref<8x16xf32, #tpu.memory_space<smem>>
    %47 = vector.broadcast %46 : f32 to vector<4x128xf32>
    %48 = arith.mulf %47, %7 : vector<4x128xf32>
    %49 = arith.addf %44, %48 : vector<4x128xf32>
    %50 = arith.index_cast %c0_i32 : i32 to index
    %c1_13 = arith.constant 1 : index
    %51 = memref.load %arg2[%50, %c1_13] : memref<8x4xf32, #tpu.memory_space<smem>>
    %52 = vector.broadcast %51 : f32 to vector<4x128xf32>
    %53 = arith.addf %49, %52 : vector<4x128xf32>
    %54 = arith.index_cast %c0_i32 : i32 to index
    %c8 = arith.constant 8 : index
    %55 = memref.load %arg1[%54, %c8] : memref<8x16xf32, #tpu.memory_space<smem>>
    %56 = vector.broadcast %55 : f32 to vector<4x128xf32>
    %57 = arith.mulf %56, %1 : vector<4x128xf32>
    %58 = arith.index_cast %c0_i32 : i32 to index
    %c9 = arith.constant 9 : index
    %59 = memref.load %arg1[%58, %c9] : memref<8x16xf32, #tpu.memory_space<smem>>
    %60 = vector.broadcast %59 : f32 to vector<4x128xf32>
    %61 = arith.mulf %60, %3 : vector<4x128xf32>
    %62 = arith.addf %57, %61 : vector<4x128xf32>
    %63 = arith.index_cast %c0_i32 : i32 to index
    %c10 = arith.constant 10 : index
    %64 = memref.load %arg1[%63, %c10] : memref<8x16xf32, #tpu.memory_space<smem>>
    %65 = vector.broadcast %64 : f32 to vector<4x128xf32>
    %66 = arith.mulf %65, %5 : vector<4x128xf32>
    %67 = arith.addf %62, %66 : vector<4x128xf32>
    %68 = arith.index_cast %c0_i32 : i32 to index
    %c11 = arith.constant 11 : index
    %69 = memref.load %arg1[%68, %c11] : memref<8x16xf32, #tpu.memory_space<smem>>
    %70 = vector.broadcast %69 : f32 to vector<4x128xf32>
    %71 = arith.mulf %70, %7 : vector<4x128xf32>
    %72 = arith.addf %67, %71 : vector<4x128xf32>
    %73 = arith.index_cast %c0_i32 : i32 to index
    %c2_14 = arith.constant 2 : index
    %74 = memref.load %arg2[%73, %c2_14] : memref<8x4xf32, #tpu.memory_space<smem>>
    %75 = vector.broadcast %74 : f32 to vector<4x128xf32>
    %76 = arith.addf %72, %75 : vector<4x128xf32>
    %77 = arith.index_cast %c0_i32 : i32 to index
    %c12 = arith.constant 12 : index
    %78 = memref.load %arg1[%77, %c12] : memref<8x16xf32, #tpu.memory_space<smem>>
    %79 = vector.broadcast %78 : f32 to vector<4x128xf32>
    %80 = arith.mulf %79, %1 : vector<4x128xf32>
    %81 = arith.index_cast %c0_i32 : i32 to index
    %c13 = arith.constant 13 : index
    %82 = memref.load %arg1[%81, %c13] : memref<8x16xf32, #tpu.memory_space<smem>>
    %83 = vector.broadcast %82 : f32 to vector<4x128xf32>
    %84 = arith.mulf %83, %3 : vector<4x128xf32>
    %85 = arith.addf %80, %84 : vector<4x128xf32>
    %86 = arith.index_cast %c0_i32 : i32 to index
    %c14 = arith.constant 14 : index
    %87 = memref.load %arg1[%86, %c14] : memref<8x16xf32, #tpu.memory_space<smem>>
    %88 = vector.broadcast %87 : f32 to vector<4x128xf32>
    %89 = arith.mulf %88, %5 : vector<4x128xf32>
    %90 = arith.addf %85, %89 : vector<4x128xf32>
    %91 = arith.index_cast %c0_i32 : i32 to index
    %c15 = arith.constant 15 : index
    %92 = memref.load %arg1[%91, %c15] : memref<8x16xf32, #tpu.memory_space<smem>>
    %93 = vector.broadcast %92 : f32 to vector<4x128xf32>
    %94 = arith.mulf %93, %7 : vector<4x128xf32>
    %95 = arith.addf %90, %94 : vector<4x128xf32>
    %96 = arith.index_cast %c0_i32 : i32 to index
    %c3_15 = arith.constant 3 : index
    %97 = memref.load %arg2[%96, %c3_15] : memref<8x4xf32, #tpu.memory_space<smem>>
    %98 = vector.broadcast %97 : f32 to vector<4x128xf32>
    %99 = arith.addf %95, %98 : vector<4x128xf32>
    %c1_i32 = arith.constant 1 : i32
    %100 = arith.index_cast %c1_i32 : i32 to index
    %c0_16 = arith.constant 0 : index
    %101 = memref.load %arg1[%100, %c0_16] : memref<8x16xf32, #tpu.memory_space<smem>>
    %102 = vector.broadcast %101 : f32 to vector<4x128xf32>
    %103 = arith.mulf %102, %30 : vector<4x128xf32>
    %104 = arith.index_cast %c1_i32 : i32 to index
    %c1_17 = arith.constant 1 : index
    %105 = memref.load %arg1[%104, %c1_17] : memref<8x16xf32, #tpu.memory_space<smem>>
    %106 = vector.broadcast %105 : f32 to vector<4x128xf32>
    %107 = arith.mulf %106, %53 : vector<4x128xf32>
    %108 = arith.addf %103, %107 : vector<4x128xf32>
    %109 = arith.index_cast %c1_i32 : i32 to index
    %c2_18 = arith.constant 2 : index
    %110 = memref.load %arg1[%109, %c2_18] : memref<8x16xf32, #tpu.memory_space<smem>>
    %111 = vector.broadcast %110 : f32 to vector<4x128xf32>
    %112 = arith.mulf %111, %76 : vector<4x128xf32>
    %113 = arith.addf %108, %112 : vector<4x128xf32>
    %114 = arith.index_cast %c1_i32 : i32 to index
    %c3_19 = arith.constant 3 : index
    %115 = memref.load %arg1[%114, %c3_19] : memref<8x16xf32, #tpu.memory_space<smem>>
    %116 = vector.broadcast %115 : f32 to vector<4x128xf32>
    %117 = arith.mulf %116, %99 : vector<4x128xf32>
    %118 = arith.addf %113, %117 : vector<4x128xf32>
    %119 = arith.index_cast %c1_i32 : i32 to index
    %c0_20 = arith.constant 0 : index
    %120 = memref.load %arg2[%119, %c0_20] : memref<8x4xf32, #tpu.memory_space<smem>>
    %121 = vector.broadcast %120 : f32 to vector<4x128xf32>
    %122 = arith.addf %118, %121 : vector<4x128xf32>
    %123 = arith.index_cast %c1_i32 : i32 to index
    %c4_21 = arith.constant 4 : index
    %124 = memref.load %arg1[%123, %c4_21] : memref<8x16xf32, #tpu.memory_space<smem>>
    %125 = vector.broadcast %124 : f32 to vector<4x128xf32>
    %126 = arith.mulf %125, %30 : vector<4x128xf32>
    %127 = arith.index_cast %c1_i32 : i32 to index
    %c5_22 = arith.constant 5 : index
    %128 = memref.load %arg1[%127, %c5_22] : memref<8x16xf32, #tpu.memory_space<smem>>
    %129 = vector.broadcast %128 : f32 to vector<4x128xf32>
    %130 = arith.mulf %129, %53 : vector<4x128xf32>
    %131 = arith.addf %126, %130 : vector<4x128xf32>
    %132 = arith.index_cast %c1_i32 : i32 to index
    %c6_23 = arith.constant 6 : index
    %133 = memref.load %arg1[%132, %c6_23] : memref<8x16xf32, #tpu.memory_space<smem>>
    %134 = vector.broadcast %133 : f32 to vector<4x128xf32>
    %135 = arith.mulf %134, %76 : vector<4x128xf32>
    %136 = arith.addf %131, %135 : vector<4x128xf32>
    %137 = arith.index_cast %c1_i32 : i32 to index
    %c7_24 = arith.constant 7 : index
    %138 = memref.load %arg1[%137, %c7_24] : memref<8x16xf32, #tpu.memory_space<smem>>
    %139 = vector.broadcast %138 : f32 to vector<4x128xf32>
    %140 = arith.mulf %139, %99 : vector<4x128xf32>
    %141 = arith.addf %136, %140 : vector<4x128xf32>
    %142 = arith.index_cast %c1_i32 : i32 to index
    %c1_25 = arith.constant 1 : index
    %143 = memref.load %arg2[%142, %c1_25] : memref<8x4xf32, #tpu.memory_space<smem>>
    %144 = vector.broadcast %143 : f32 to vector<4x128xf32>
    %145 = arith.addf %141, %144 : vector<4x128xf32>
    %146 = arith.index_cast %c1_i32 : i32 to index
    %c8_26 = arith.constant 8 : index
    %147 = memref.load %arg1[%146, %c8_26] : memref<8x16xf32, #tpu.memory_space<smem>>
    %148 = vector.broadcast %147 : f32 to vector<4x128xf32>
    %149 = arith.mulf %148, %30 : vector<4x128xf32>
    %150 = arith.index_cast %c1_i32 : i32 to index
    %c9_27 = arith.constant 9 : index
    %151 = memref.load %arg1[%150, %c9_27] : memref<8x16xf32, #tpu.memory_space<smem>>
    %152 = vector.broadcast %151 : f32 to vector<4x128xf32>
    %153 = arith.mulf %152, %53 : vector<4x128xf32>
    %154 = arith.addf %149, %153 : vector<4x128xf32>
    %155 = arith.index_cast %c1_i32 : i32 to index
    %c10_28 = arith.constant 10 : index
    %156 = memref.load %arg1[%155, %c10_28] : memref<8x16xf32, #tpu.memory_space<smem>>
    %157 = vector.broadcast %156 : f32 to vector<4x128xf32>
    %158 = arith.mulf %157, %76 : vector<4x128xf32>
    %159 = arith.addf %154, %158 : vector<4x128xf32>
    %160 = arith.index_cast %c1_i32 : i32 to index
    %c11_29 = arith.constant 11 : index
    %161 = memref.load %arg1[%160, %c11_29] : memref<8x16xf32, #tpu.memory_space<smem>>
    %162 = vector.broadcast %161 : f32 to vector<4x128xf32>
    %163 = arith.mulf %162, %99 : vector<4x128xf32>
    %164 = arith.addf %159, %163 : vector<4x128xf32>
    %165 = arith.index_cast %c1_i32 : i32 to index
    %c2_30 = arith.constant 2 : index
    %166 = memref.load %arg2[%165, %c2_30] : memref<8x4xf32, #tpu.memory_space<smem>>
    %167 = vector.broadcast %166 : f32 to vector<4x128xf32>
    %168 = arith.addf %164, %167 : vector<4x128xf32>
    %169 = arith.index_cast %c1_i32 : i32 to index
    %c12_31 = arith.constant 12 : index
    %170 = memref.load %arg1[%169, %c12_31] : memref<8x16xf32, #tpu.memory_space<smem>>
    %171 = vector.broadcast %170 : f32 to vector<4x128xf32>
    %172 = arith.mulf %171, %30 : vector<4x128xf32>
    %173 = arith.index_cast %c1_i32 : i32 to index
    %c13_32 = arith.constant 13 : index
    %174 = memref.load %arg1[%173, %c13_32] : memref<8x16xf32, #tpu.memory_space<smem>>
    %175 = vector.broadcast %174 : f32 to vector<4x128xf32>
    %176 = arith.mulf %175, %53 : vector<4x128xf32>
    %177 = arith.addf %172, %176 : vector<4x128xf32>
    %178 = arith.index_cast %c1_i32 : i32 to index
    %c14_33 = arith.constant 14 : index
    %179 = memref.load %arg1[%178, %c14_33] : memref<8x16xf32, #tpu.memory_space<smem>>
    %180 = vector.broadcast %179 : f32 to vector<4x128xf32>
    %181 = arith.mulf %180, %76 : vector<4x128xf32>
    %182 = arith.addf %177, %181 : vector<4x128xf32>
    %183 = arith.index_cast %c1_i32 : i32 to index
    %c15_34 = arith.constant 15 : index
    %184 = memref.load %arg1[%183, %c15_34] : memref<8x16xf32, #tpu.memory_space<smem>>
    %185 = vector.broadcast %184 : f32 to vector<4x128xf32>
    %186 = arith.mulf %185, %99 : vector<4x128xf32>
    %187 = arith.addf %182, %186 : vector<4x128xf32>
    %188 = arith.index_cast %c1_i32 : i32 to index
    %c3_35 = arith.constant 3 : index
    %189 = memref.load %arg2[%188, %c3_35] : memref<8x4xf32, #tpu.memory_space<smem>>
    %190 = vector.broadcast %189 : f32 to vector<4x128xf32>
    %191 = arith.addf %187, %190 : vector<4x128xf32>
    %c2_i32 = arith.constant 2 : i32
    %192 = arith.index_cast %c2_i32 : i32 to index
    %c0_36 = arith.constant 0 : index
    %193 = memref.load %arg1[%192, %c0_36] : memref<8x16xf32, #tpu.memory_space<smem>>
    %194 = vector.broadcast %193 : f32 to vector<4x128xf32>
    %195 = arith.mulf %194, %122 : vector<4x128xf32>
    %196 = arith.index_cast %c2_i32 : i32 to index
    %c1_37 = arith.constant 1 : index
    %197 = memref.load %arg1[%196, %c1_37] : memref<8x16xf32, #tpu.memory_space<smem>>
    %198 = vector.broadcast %197 : f32 to vector<4x128xf32>
    %199 = arith.mulf %198, %145 : vector<4x128xf32>
    %200 = arith.addf %195, %199 : vector<4x128xf32>
    %201 = arith.index_cast %c2_i32 : i32 to index
    %c2_38 = arith.constant 2 : index
    %202 = memref.load %arg1[%201, %c2_38] : memref<8x16xf32, #tpu.memory_space<smem>>
    %203 = vector.broadcast %202 : f32 to vector<4x128xf32>
    %204 = arith.mulf %203, %168 : vector<4x128xf32>
    %205 = arith.addf %200, %204 : vector<4x128xf32>
    %206 = arith.index_cast %c2_i32 : i32 to index
    %c3_39 = arith.constant 3 : index
    %207 = memref.load %arg1[%206, %c3_39] : memref<8x16xf32, #tpu.memory_space<smem>>
    %208 = vector.broadcast %207 : f32 to vector<4x128xf32>
    %209 = arith.mulf %208, %191 : vector<4x128xf32>
    %210 = arith.addf %205, %209 : vector<4x128xf32>
    %211 = arith.index_cast %c2_i32 : i32 to index
    %c0_40 = arith.constant 0 : index
    %212 = memref.load %arg2[%211, %c0_40] : memref<8x4xf32, #tpu.memory_space<smem>>
    %213 = vector.broadcast %212 : f32 to vector<4x128xf32>
    %214 = arith.addf %210, %213 : vector<4x128xf32>
    %215 = arith.index_cast %c2_i32 : i32 to index
    %c4_41 = arith.constant 4 : index
    %216 = memref.load %arg1[%215, %c4_41] : memref<8x16xf32, #tpu.memory_space<smem>>
    %217 = vector.broadcast %216 : f32 to vector<4x128xf32>
    %218 = arith.mulf %217, %122 : vector<4x128xf32>
    %219 = arith.index_cast %c2_i32 : i32 to index
    %c5_42 = arith.constant 5 : index
    %220 = memref.load %arg1[%219, %c5_42] : memref<8x16xf32, #tpu.memory_space<smem>>
    %221 = vector.broadcast %220 : f32 to vector<4x128xf32>
    %222 = arith.mulf %221, %145 : vector<4x128xf32>
    %223 = arith.addf %218, %222 : vector<4x128xf32>
    %224 = arith.index_cast %c2_i32 : i32 to index
    %c6_43 = arith.constant 6 : index
    %225 = memref.load %arg1[%224, %c6_43] : memref<8x16xf32, #tpu.memory_space<smem>>
    %226 = vector.broadcast %225 : f32 to vector<4x128xf32>
    %227 = arith.mulf %226, %168 : vector<4x128xf32>
    %228 = arith.addf %223, %227 : vector<4x128xf32>
    %229 = arith.index_cast %c2_i32 : i32 to index
    %c7_44 = arith.constant 7 : index
    %230 = memref.load %arg1[%229, %c7_44] : memref<8x16xf32, #tpu.memory_space<smem>>
    %231 = vector.broadcast %230 : f32 to vector<4x128xf32>
    %232 = arith.mulf %231, %191 : vector<4x128xf32>
    %233 = arith.addf %228, %232 : vector<4x128xf32>
    %234 = arith.index_cast %c2_i32 : i32 to index
    %c1_45 = arith.constant 1 : index
    %235 = memref.load %arg2[%234, %c1_45] : memref<8x4xf32, #tpu.memory_space<smem>>
    %236 = vector.broadcast %235 : f32 to vector<4x128xf32>
    %237 = arith.addf %233, %236 : vector<4x128xf32>
    %238 = arith.index_cast %c2_i32 : i32 to index
    %c8_46 = arith.constant 8 : index
    %239 = memref.load %arg1[%238, %c8_46] : memref<8x16xf32, #tpu.memory_space<smem>>
    %240 = vector.broadcast %239 : f32 to vector<4x128xf32>
    %241 = arith.mulf %240, %122 : vector<4x128xf32>
    %242 = arith.index_cast %c2_i32 : i32 to index
    %c9_47 = arith.constant 9 : index
    %243 = memref.load %arg1[%242, %c9_47] : memref<8x16xf32, #tpu.memory_space<smem>>
    %244 = vector.broadcast %243 : f32 to vector<4x128xf32>
    %245 = arith.mulf %244, %145 : vector<4x128xf32>
    %246 = arith.addf %241, %245 : vector<4x128xf32>
    %247 = arith.index_cast %c2_i32 : i32 to index
    %c10_48 = arith.constant 10 : index
    %248 = memref.load %arg1[%247, %c10_48] : memref<8x16xf32, #tpu.memory_space<smem>>
    %249 = vector.broadcast %248 : f32 to vector<4x128xf32>
    %250 = arith.mulf %249, %168 : vector<4x128xf32>
    %251 = arith.addf %246, %250 : vector<4x128xf32>
    %252 = arith.index_cast %c2_i32 : i32 to index
    %c11_49 = arith.constant 11 : index
    %253 = memref.load %arg1[%252, %c11_49] : memref<8x16xf32, #tpu.memory_space<smem>>
    %254 = vector.broadcast %253 : f32 to vector<4x128xf32>
    %255 = arith.mulf %254, %191 : vector<4x128xf32>
    %256 = arith.addf %251, %255 : vector<4x128xf32>
    %257 = arith.index_cast %c2_i32 : i32 to index
    %c2_50 = arith.constant 2 : index
    %258 = memref.load %arg2[%257, %c2_50] : memref<8x4xf32, #tpu.memory_space<smem>>
    %259 = vector.broadcast %258 : f32 to vector<4x128xf32>
    %260 = arith.addf %256, %259 : vector<4x128xf32>
    %261 = arith.index_cast %c2_i32 : i32 to index
    %c12_51 = arith.constant 12 : index
    %262 = memref.load %arg1[%261, %c12_51] : memref<8x16xf32, #tpu.memory_space<smem>>
    %263 = vector.broadcast %262 : f32 to vector<4x128xf32>
    %264 = arith.mulf %263, %122 : vector<4x128xf32>
    %265 = arith.index_cast %c2_i32 : i32 to index
    %c13_52 = arith.constant 13 : index
    %266 = memref.load %arg1[%265, %c13_52] : memref<8x16xf32, #tpu.memory_space<smem>>
    %267 = vector.broadcast %266 : f32 to vector<4x128xf32>
    %268 = arith.mulf %267, %145 : vector<4x128xf32>
    %269 = arith.addf %264, %268 : vector<4x128xf32>
    %270 = arith.index_cast %c2_i32 : i32 to index
    %c14_53 = arith.constant 14 : index
    %271 = memref.load %arg1[%270, %c14_53] : memref<8x16xf32, #tpu.memory_space<smem>>
    %272 = vector.broadcast %271 : f32 to vector<4x128xf32>
    %273 = arith.mulf %272, %168 : vector<4x128xf32>
    %274 = arith.addf %269, %273 : vector<4x128xf32>
    %275 = arith.index_cast %c2_i32 : i32 to index
    %c15_54 = arith.constant 15 : index
    %276 = memref.load %arg1[%275, %c15_54] : memref<8x16xf32, #tpu.memory_space<smem>>
    %277 = vector.broadcast %276 : f32 to vector<4x128xf32>
    %278 = arith.mulf %277, %191 : vector<4x128xf32>
    %279 = arith.addf %274, %278 : vector<4x128xf32>
    %280 = arith.index_cast %c2_i32 : i32 to index
    %c3_55 = arith.constant 3 : index
    %281 = memref.load %arg2[%280, %c3_55] : memref<8x4xf32, #tpu.memory_space<smem>>
    %282 = vector.broadcast %281 : f32 to vector<4x128xf32>
    %283 = arith.addf %279, %282 : vector<4x128xf32>
    %c3_i32 = arith.constant 3 : i32
    %284 = arith.index_cast %c3_i32 : i32 to index
    %c0_56 = arith.constant 0 : index
    %285 = memref.load %arg1[%284, %c0_56] : memref<8x16xf32, #tpu.memory_space<smem>>
    %286 = vector.broadcast %285 : f32 to vector<4x128xf32>
    %287 = arith.mulf %286, %214 : vector<4x128xf32>
    %288 = arith.index_cast %c3_i32 : i32 to index
    %c1_57 = arith.constant 1 : index
    %289 = memref.load %arg1[%288, %c1_57] : memref<8x16xf32, #tpu.memory_space<smem>>
    %290 = vector.broadcast %289 : f32 to vector<4x128xf32>
    %291 = arith.mulf %290, %237 : vector<4x128xf32>
    %292 = arith.addf %287, %291 : vector<4x128xf32>
    %293 = arith.index_cast %c3_i32 : i32 to index
    %c2_58 = arith.constant 2 : index
    %294 = memref.load %arg1[%293, %c2_58] : memref<8x16xf32, #tpu.memory_space<smem>>
    %295 = vector.broadcast %294 : f32 to vector<4x128xf32>
    %296 = arith.mulf %295, %260 : vector<4x128xf32>
    %297 = arith.addf %292, %296 : vector<4x128xf32>
    %298 = arith.index_cast %c3_i32 : i32 to index
    %c3_59 = arith.constant 3 : index
    %299 = memref.load %arg1[%298, %c3_59] : memref<8x16xf32, #tpu.memory_space<smem>>
    %300 = vector.broadcast %299 : f32 to vector<4x128xf32>
    %301 = arith.mulf %300, %283 : vector<4x128xf32>
    %302 = arith.addf %297, %301 : vector<4x128xf32>
    %303 = arith.index_cast %c3_i32 : i32 to index
    %c0_60 = arith.constant 0 : index
    %304 = memref.load %arg2[%303, %c0_60] : memref<8x4xf32, #tpu.memory_space<smem>>
    %305 = vector.broadcast %304 : f32 to vector<4x128xf32>
    %306 = arith.addf %302, %305 : vector<4x128xf32>
    %307 = arith.index_cast %c3_i32 : i32 to index
    %c4_61 = arith.constant 4 : index
    %308 = memref.load %arg1[%307, %c4_61] : memref<8x16xf32, #tpu.memory_space<smem>>
    %309 = vector.broadcast %308 : f32 to vector<4x128xf32>
    %310 = arith.mulf %309, %214 : vector<4x128xf32>
    %311 = arith.index_cast %c3_i32 : i32 to index
    %c5_62 = arith.constant 5 : index
    %312 = memref.load %arg1[%311, %c5_62] : memref<8x16xf32, #tpu.memory_space<smem>>
    %313 = vector.broadcast %312 : f32 to vector<4x128xf32>
    %314 = arith.mulf %313, %237 : vector<4x128xf32>
    %315 = arith.addf %310, %314 : vector<4x128xf32>
    %316 = arith.index_cast %c3_i32 : i32 to index
    %c6_63 = arith.constant 6 : index
    %317 = memref.load %arg1[%316, %c6_63] : memref<8x16xf32, #tpu.memory_space<smem>>
    %318 = vector.broadcast %317 : f32 to vector<4x128xf32>
    %319 = arith.mulf %318, %260 : vector<4x128xf32>
    %320 = arith.addf %315, %319 : vector<4x128xf32>
    %321 = arith.index_cast %c3_i32 : i32 to index
    %c7_64 = arith.constant 7 : index
    %322 = memref.load %arg1[%321, %c7_64] : memref<8x16xf32, #tpu.memory_space<smem>>
    %323 = vector.broadcast %322 : f32 to vector<4x128xf32>
    %324 = arith.mulf %323, %283 : vector<4x128xf32>
    %325 = arith.addf %320, %324 : vector<4x128xf32>
    %326 = arith.index_cast %c3_i32 : i32 to index
    %c1_65 = arith.constant 1 : index
    %327 = memref.load %arg2[%326, %c1_65] : memref<8x4xf32, #tpu.memory_space<smem>>
    %328 = vector.broadcast %327 : f32 to vector<4x128xf32>
    %329 = arith.addf %325, %328 : vector<4x128xf32>
    %330 = arith.index_cast %c3_i32 : i32 to index
    %c8_66 = arith.constant 8 : index
    %331 = memref.load %arg1[%330, %c8_66] : memref<8x16xf32, #tpu.memory_space<smem>>
    %332 = vector.broadcast %331 : f32 to vector<4x128xf32>
    %333 = arith.mulf %332, %214 : vector<4x128xf32>
    %334 = arith.index_cast %c3_i32 : i32 to index
    %c9_67 = arith.constant 9 : index
    %335 = memref.load %arg1[%334, %c9_67] : memref<8x16xf32, #tpu.memory_space<smem>>
    %336 = vector.broadcast %335 : f32 to vector<4x128xf32>
    %337 = arith.mulf %336, %237 : vector<4x128xf32>
    %338 = arith.addf %333, %337 : vector<4x128xf32>
    %339 = arith.index_cast %c3_i32 : i32 to index
    %c10_68 = arith.constant 10 : index
    %340 = memref.load %arg1[%339, %c10_68] : memref<8x16xf32, #tpu.memory_space<smem>>
    %341 = vector.broadcast %340 : f32 to vector<4x128xf32>
    %342 = arith.mulf %341, %260 : vector<4x128xf32>
    %343 = arith.addf %338, %342 : vector<4x128xf32>
    %344 = arith.index_cast %c3_i32 : i32 to index
    %c11_69 = arith.constant 11 : index
    %345 = memref.load %arg1[%344, %c11_69] : memref<8x16xf32, #tpu.memory_space<smem>>
    %346 = vector.broadcast %345 : f32 to vector<4x128xf32>
    %347 = arith.mulf %346, %283 : vector<4x128xf32>
    %348 = arith.addf %343, %347 : vector<4x128xf32>
    %349 = arith.index_cast %c3_i32 : i32 to index
    %c2_70 = arith.constant 2 : index
    %350 = memref.load %arg2[%349, %c2_70] : memref<8x4xf32, #tpu.memory_space<smem>>
    %351 = vector.broadcast %350 : f32 to vector<4x128xf32>
    %352 = arith.addf %348, %351 : vector<4x128xf32>
    %353 = arith.index_cast %c3_i32 : i32 to index
    %c12_71 = arith.constant 12 : index
    %354 = memref.load %arg1[%353, %c12_71] : memref<8x16xf32, #tpu.memory_space<smem>>
    %355 = vector.broadcast %354 : f32 to vector<4x128xf32>
    %356 = arith.mulf %355, %214 : vector<4x128xf32>
    %357 = arith.index_cast %c3_i32 : i32 to index
    %c13_72 = arith.constant 13 : index
    %358 = memref.load %arg1[%357, %c13_72] : memref<8x16xf32, #tpu.memory_space<smem>>
    %359 = vector.broadcast %358 : f32 to vector<4x128xf32>
    %360 = arith.mulf %359, %237 : vector<4x128xf32>
    %361 = arith.addf %356, %360 : vector<4x128xf32>
    %362 = arith.index_cast %c3_i32 : i32 to index
    %c14_73 = arith.constant 14 : index
    %363 = memref.load %arg1[%362, %c14_73] : memref<8x16xf32, #tpu.memory_space<smem>>
    %364 = vector.broadcast %363 : f32 to vector<4x128xf32>
    %365 = arith.mulf %364, %260 : vector<4x128xf32>
    %366 = arith.addf %361, %365 : vector<4x128xf32>
    %367 = arith.index_cast %c3_i32 : i32 to index
    %c15_74 = arith.constant 15 : index
    %368 = memref.load %arg1[%367, %c15_74] : memref<8x16xf32, #tpu.memory_space<smem>>
    %369 = vector.broadcast %368 : f32 to vector<4x128xf32>
    %370 = arith.mulf %369, %283 : vector<4x128xf32>
    %371 = arith.addf %366, %370 : vector<4x128xf32>
    %372 = arith.index_cast %c3_i32 : i32 to index
    %c3_75 = arith.constant 3 : index
    %373 = memref.load %arg2[%372, %c3_75] : memref<8x4xf32, #tpu.memory_space<smem>>
    %374 = vector.broadcast %373 : f32 to vector<4x128xf32>
    %375 = arith.addf %371, %374 : vector<4x128xf32>
    %c4_i32 = arith.constant 4 : i32
    %376 = arith.index_cast %c4_i32 : i32 to index
    %c0_76 = arith.constant 0 : index
    %377 = memref.load %arg1[%376, %c0_76] : memref<8x16xf32, #tpu.memory_space<smem>>
    %378 = vector.broadcast %377 : f32 to vector<4x128xf32>
    %379 = arith.mulf %378, %306 : vector<4x128xf32>
    %380 = arith.index_cast %c4_i32 : i32 to index
    %c1_77 = arith.constant 1 : index
    %381 = memref.load %arg1[%380, %c1_77] : memref<8x16xf32, #tpu.memory_space<smem>>
    %382 = vector.broadcast %381 : f32 to vector<4x128xf32>
    %383 = arith.mulf %382, %329 : vector<4x128xf32>
    %384 = arith.addf %379, %383 : vector<4x128xf32>
    %385 = arith.index_cast %c4_i32 : i32 to index
    %c2_78 = arith.constant 2 : index
    %386 = memref.load %arg1[%385, %c2_78] : memref<8x16xf32, #tpu.memory_space<smem>>
    %387 = vector.broadcast %386 : f32 to vector<4x128xf32>
    %388 = arith.mulf %387, %352 : vector<4x128xf32>
    %389 = arith.addf %384, %388 : vector<4x128xf32>
    %390 = arith.index_cast %c4_i32 : i32 to index
    %c3_79 = arith.constant 3 : index
    %391 = memref.load %arg1[%390, %c3_79] : memref<8x16xf32, #tpu.memory_space<smem>>
    %392 = vector.broadcast %391 : f32 to vector<4x128xf32>
    %393 = arith.mulf %392, %375 : vector<4x128xf32>
    %394 = arith.addf %389, %393 : vector<4x128xf32>
    %395 = arith.index_cast %c4_i32 : i32 to index
    %c0_80 = arith.constant 0 : index
    %396 = memref.load %arg2[%395, %c0_80] : memref<8x4xf32, #tpu.memory_space<smem>>
    %397 = vector.broadcast %396 : f32 to vector<4x128xf32>
    %398 = arith.addf %394, %397 : vector<4x128xf32>
    %399 = arith.index_cast %c4_i32 : i32 to index
    %c4_81 = arith.constant 4 : index
    %400 = memref.load %arg1[%399, %c4_81] : memref<8x16xf32, #tpu.memory_space<smem>>
    %401 = vector.broadcast %400 : f32 to vector<4x128xf32>
    %402 = arith.mulf %401, %306 : vector<4x128xf32>
    %403 = arith.index_cast %c4_i32 : i32 to index
    %c5_82 = arith.constant 5 : index
    %404 = memref.load %arg1[%403, %c5_82] : memref<8x16xf32, #tpu.memory_space<smem>>
    %405 = vector.broadcast %404 : f32 to vector<4x128xf32>
    %406 = arith.mulf %405, %329 : vector<4x128xf32>
    %407 = arith.addf %402, %406 : vector<4x128xf32>
    %408 = arith.index_cast %c4_i32 : i32 to index
    %c6_83 = arith.constant 6 : index
    %409 = memref.load %arg1[%408, %c6_83] : memref<8x16xf32, #tpu.memory_space<smem>>
    %410 = vector.broadcast %409 : f32 to vector<4x128xf32>
    %411 = arith.mulf %410, %352 : vector<4x128xf32>
    %412 = arith.addf %407, %411 : vector<4x128xf32>
    %413 = arith.index_cast %c4_i32 : i32 to index
    %c7_84 = arith.constant 7 : index
    %414 = memref.load %arg1[%413, %c7_84] : memref<8x16xf32, #tpu.memory_space<smem>>
    %415 = vector.broadcast %414 : f32 to vector<4x128xf32>
    %416 = arith.mulf %415, %375 : vector<4x128xf32>
    %417 = arith.addf %412, %416 : vector<4x128xf32>
    %418 = arith.index_cast %c4_i32 : i32 to index
    %c1_85 = arith.constant 1 : index
    %419 = memref.load %arg2[%418, %c1_85] : memref<8x4xf32, #tpu.memory_space<smem>>
    %420 = vector.broadcast %419 : f32 to vector<4x128xf32>
    %421 = arith.addf %417, %420 : vector<4x128xf32>
    %422 = arith.index_cast %c4_i32 : i32 to index
    %c8_86 = arith.constant 8 : index
    %423 = memref.load %arg1[%422, %c8_86] : memref<8x16xf32, #tpu.memory_space<smem>>
    %424 = vector.broadcast %423 : f32 to vector<4x128xf32>
    %425 = arith.mulf %424, %306 : vector<4x128xf32>
    %426 = arith.index_cast %c4_i32 : i32 to index
    %c9_87 = arith.constant 9 : index
    %427 = memref.load %arg1[%426, %c9_87] : memref<8x16xf32, #tpu.memory_space<smem>>
    %428 = vector.broadcast %427 : f32 to vector<4x128xf32>
    %429 = arith.mulf %428, %329 : vector<4x128xf32>
    %430 = arith.addf %425, %429 : vector<4x128xf32>
    %431 = arith.index_cast %c4_i32 : i32 to index
    %c10_88 = arith.constant 10 : index
    %432 = memref.load %arg1[%431, %c10_88] : memref<8x16xf32, #tpu.memory_space<smem>>
    %433 = vector.broadcast %432 : f32 to vector<4x128xf32>
    %434 = arith.mulf %433, %352 : vector<4x128xf32>
    %435 = arith.addf %430, %434 : vector<4x128xf32>
    %436 = arith.index_cast %c4_i32 : i32 to index
    %c11_89 = arith.constant 11 : index
    %437 = memref.load %arg1[%436, %c11_89] : memref<8x16xf32, #tpu.memory_space<smem>>
    %438 = vector.broadcast %437 : f32 to vector<4x128xf32>
    %439 = arith.mulf %438, %375 : vector<4x128xf32>
    %440 = arith.addf %435, %439 : vector<4x128xf32>
    %441 = arith.index_cast %c4_i32 : i32 to index
    %c2_90 = arith.constant 2 : index
    %442 = memref.load %arg2[%441, %c2_90] : memref<8x4xf32, #tpu.memory_space<smem>>
    %443 = vector.broadcast %442 : f32 to vector<4x128xf32>
    %444 = arith.addf %440, %443 : vector<4x128xf32>
    %445 = arith.index_cast %c4_i32 : i32 to index
    %c12_91 = arith.constant 12 : index
    %446 = memref.load %arg1[%445, %c12_91] : memref<8x16xf32, #tpu.memory_space<smem>>
    %447 = vector.broadcast %446 : f32 to vector<4x128xf32>
    %448 = arith.mulf %447, %306 : vector<4x128xf32>
    %449 = arith.index_cast %c4_i32 : i32 to index
    %c13_92 = arith.constant 13 : index
    %450 = memref.load %arg1[%449, %c13_92] : memref<8x16xf32, #tpu.memory_space<smem>>
    %451 = vector.broadcast %450 : f32 to vector<4x128xf32>
    %452 = arith.mulf %451, %329 : vector<4x128xf32>
    %453 = arith.addf %448, %452 : vector<4x128xf32>
    %454 = arith.index_cast %c4_i32 : i32 to index
    %c14_93 = arith.constant 14 : index
    %455 = memref.load %arg1[%454, %c14_93] : memref<8x16xf32, #tpu.memory_space<smem>>
    %456 = vector.broadcast %455 : f32 to vector<4x128xf32>
    %457 = arith.mulf %456, %352 : vector<4x128xf32>
    %458 = arith.addf %453, %457 : vector<4x128xf32>
    %459 = arith.index_cast %c4_i32 : i32 to index
    %c15_94 = arith.constant 15 : index
    %460 = memref.load %arg1[%459, %c15_94] : memref<8x16xf32, #tpu.memory_space<smem>>
    %461 = vector.broadcast %460 : f32 to vector<4x128xf32>
    %462 = arith.mulf %461, %375 : vector<4x128xf32>
    %463 = arith.addf %458, %462 : vector<4x128xf32>
    %464 = arith.index_cast %c4_i32 : i32 to index
    %c3_95 = arith.constant 3 : index
    %465 = memref.load %arg2[%464, %c3_95] : memref<8x4xf32, #tpu.memory_space<smem>>
    %466 = vector.broadcast %465 : f32 to vector<4x128xf32>
    %467 = arith.addf %463, %466 : vector<4x128xf32>
    %c5_i32 = arith.constant 5 : i32
    %468 = arith.index_cast %c5_i32 : i32 to index
    %c0_96 = arith.constant 0 : index
    %469 = memref.load %arg1[%468, %c0_96] : memref<8x16xf32, #tpu.memory_space<smem>>
    %470 = vector.broadcast %469 : f32 to vector<4x128xf32>
    %471 = arith.mulf %470, %398 : vector<4x128xf32>
    %472 = arith.index_cast %c5_i32 : i32 to index
    %c1_97 = arith.constant 1 : index
    %473 = memref.load %arg1[%472, %c1_97] : memref<8x16xf32, #tpu.memory_space<smem>>
    %474 = vector.broadcast %473 : f32 to vector<4x128xf32>
    %475 = arith.mulf %474, %421 : vector<4x128xf32>
    %476 = arith.addf %471, %475 : vector<4x128xf32>
    %477 = arith.index_cast %c5_i32 : i32 to index
    %c2_98 = arith.constant 2 : index
    %478 = memref.load %arg1[%477, %c2_98] : memref<8x16xf32, #tpu.memory_space<smem>>
    %479 = vector.broadcast %478 : f32 to vector<4x128xf32>
    %480 = arith.mulf %479, %444 : vector<4x128xf32>
    %481 = arith.addf %476, %480 : vector<4x128xf32>
    %482 = arith.index_cast %c5_i32 : i32 to index
    %c3_99 = arith.constant 3 : index
    %483 = memref.load %arg1[%482, %c3_99] : memref<8x16xf32, #tpu.memory_space<smem>>
    %484 = vector.broadcast %483 : f32 to vector<4x128xf32>
    %485 = arith.mulf %484, %467 : vector<4x128xf32>
    %486 = arith.addf %481, %485 : vector<4x128xf32>
    %487 = arith.index_cast %c5_i32 : i32 to index
    %c0_100 = arith.constant 0 : index
    %488 = memref.load %arg2[%487, %c0_100] : memref<8x4xf32, #tpu.memory_space<smem>>
    %489 = vector.broadcast %488 : f32 to vector<4x128xf32>
    %490 = arith.addf %486, %489 : vector<4x128xf32>
    %491 = arith.index_cast %c5_i32 : i32 to index
    %c4_101 = arith.constant 4 : index
    %492 = memref.load %arg1[%491, %c4_101] : memref<8x16xf32, #tpu.memory_space<smem>>
    %493 = vector.broadcast %492 : f32 to vector<4x128xf32>
    %494 = arith.mulf %493, %398 : vector<4x128xf32>
    %495 = arith.index_cast %c5_i32 : i32 to index
    %c5_102 = arith.constant 5 : index
    %496 = memref.load %arg1[%495, %c5_102] : memref<8x16xf32, #tpu.memory_space<smem>>
    %497 = vector.broadcast %496 : f32 to vector<4x128xf32>
    %498 = arith.mulf %497, %421 : vector<4x128xf32>
    %499 = arith.addf %494, %498 : vector<4x128xf32>
    %500 = arith.index_cast %c5_i32 : i32 to index
    %c6_103 = arith.constant 6 : index
    %501 = memref.load %arg1[%500, %c6_103] : memref<8x16xf32, #tpu.memory_space<smem>>
    %502 = vector.broadcast %501 : f32 to vector<4x128xf32>
    %503 = arith.mulf %502, %444 : vector<4x128xf32>
    %504 = arith.addf %499, %503 : vector<4x128xf32>
    %505 = arith.index_cast %c5_i32 : i32 to index
    %c7_104 = arith.constant 7 : index
    %506 = memref.load %arg1[%505, %c7_104] : memref<8x16xf32, #tpu.memory_space<smem>>
    %507 = vector.broadcast %506 : f32 to vector<4x128xf32>
    %508 = arith.mulf %507, %467 : vector<4x128xf32>
    %509 = arith.addf %504, %508 : vector<4x128xf32>
    %510 = arith.index_cast %c5_i32 : i32 to index
    %c1_105 = arith.constant 1 : index
    %511 = memref.load %arg2[%510, %c1_105] : memref<8x4xf32, #tpu.memory_space<smem>>
    %512 = vector.broadcast %511 : f32 to vector<4x128xf32>
    %513 = arith.addf %509, %512 : vector<4x128xf32>
    %514 = arith.index_cast %c5_i32 : i32 to index
    %c8_106 = arith.constant 8 : index
    %515 = memref.load %arg1[%514, %c8_106] : memref<8x16xf32, #tpu.memory_space<smem>>
    %516 = vector.broadcast %515 : f32 to vector<4x128xf32>
    %517 = arith.mulf %516, %398 : vector<4x128xf32>
    %518 = arith.index_cast %c5_i32 : i32 to index
    %c9_107 = arith.constant 9 : index
    %519 = memref.load %arg1[%518, %c9_107] : memref<8x16xf32, #tpu.memory_space<smem>>
    %520 = vector.broadcast %519 : f32 to vector<4x128xf32>
    %521 = arith.mulf %520, %421 : vector<4x128xf32>
    %522 = arith.addf %517, %521 : vector<4x128xf32>
    %523 = arith.index_cast %c5_i32 : i32 to index
    %c10_108 = arith.constant 10 : index
    %524 = memref.load %arg1[%523, %c10_108] : memref<8x16xf32, #tpu.memory_space<smem>>
    %525 = vector.broadcast %524 : f32 to vector<4x128xf32>
    %526 = arith.mulf %525, %444 : vector<4x128xf32>
    %527 = arith.addf %522, %526 : vector<4x128xf32>
    %528 = arith.index_cast %c5_i32 : i32 to index
    %c11_109 = arith.constant 11 : index
    %529 = memref.load %arg1[%528, %c11_109] : memref<8x16xf32, #tpu.memory_space<smem>>
    %530 = vector.broadcast %529 : f32 to vector<4x128xf32>
    %531 = arith.mulf %530, %467 : vector<4x128xf32>
    %532 = arith.addf %527, %531 : vector<4x128xf32>
    %533 = arith.index_cast %c5_i32 : i32 to index
    %c2_110 = arith.constant 2 : index
    %534 = memref.load %arg2[%533, %c2_110] : memref<8x4xf32, #tpu.memory_space<smem>>
    %535 = vector.broadcast %534 : f32 to vector<4x128xf32>
    %536 = arith.addf %532, %535 : vector<4x128xf32>
    %537 = arith.index_cast %c5_i32 : i32 to index
    %c12_111 = arith.constant 12 : index
    %538 = memref.load %arg1[%537, %c12_111] : memref<8x16xf32, #tpu.memory_space<smem>>
    %539 = vector.broadcast %538 : f32 to vector<4x128xf32>
    %540 = arith.mulf %539, %398 : vector<4x128xf32>
    %541 = arith.index_cast %c5_i32 : i32 to index
    %c13_112 = arith.constant 13 : index
    %542 = memref.load %arg1[%541, %c13_112] : memref<8x16xf32, #tpu.memory_space<smem>>
    %543 = vector.broadcast %542 : f32 to vector<4x128xf32>
    %544 = arith.mulf %543, %421 : vector<4x128xf32>
    %545 = arith.addf %540, %544 : vector<4x128xf32>
    %546 = arith.index_cast %c5_i32 : i32 to index
    %c14_113 = arith.constant 14 : index
    %547 = memref.load %arg1[%546, %c14_113] : memref<8x16xf32, #tpu.memory_space<smem>>
    %548 = vector.broadcast %547 : f32 to vector<4x128xf32>
    %549 = arith.mulf %548, %444 : vector<4x128xf32>
    %550 = arith.addf %545, %549 : vector<4x128xf32>
    %551 = arith.index_cast %c5_i32 : i32 to index
    %c15_114 = arith.constant 15 : index
    %552 = memref.load %arg1[%551, %c15_114] : memref<8x16xf32, #tpu.memory_space<smem>>
    %553 = vector.broadcast %552 : f32 to vector<4x128xf32>
    %554 = arith.mulf %553, %467 : vector<4x128xf32>
    %555 = arith.addf %550, %554 : vector<4x128xf32>
    %556 = arith.index_cast %c5_i32 : i32 to index
    %c3_115 = arith.constant 3 : index
    %557 = memref.load %arg2[%556, %c3_115] : memref<8x4xf32, #tpu.memory_space<smem>>
    %558 = vector.broadcast %557 : f32 to vector<4x128xf32>
    %559 = arith.addf %555, %558 : vector<4x128xf32>
    %c6_i32 = arith.constant 6 : i32
    %560 = arith.index_cast %c6_i32 : i32 to index
    %c0_116 = arith.constant 0 : index
    %561 = memref.load %arg1[%560, %c0_116] : memref<8x16xf32, #tpu.memory_space<smem>>
    %562 = vector.broadcast %561 : f32 to vector<4x128xf32>
    %563 = arith.mulf %562, %490 : vector<4x128xf32>
    %564 = arith.index_cast %c6_i32 : i32 to index
    %c1_117 = arith.constant 1 : index
    %565 = memref.load %arg1[%564, %c1_117] : memref<8x16xf32, #tpu.memory_space<smem>>
    %566 = vector.broadcast %565 : f32 to vector<4x128xf32>
    %567 = arith.mulf %566, %513 : vector<4x128xf32>
    %568 = arith.addf %563, %567 : vector<4x128xf32>
    %569 = arith.index_cast %c6_i32 : i32 to index
    %c2_118 = arith.constant 2 : index
    %570 = memref.load %arg1[%569, %c2_118] : memref<8x16xf32, #tpu.memory_space<smem>>
    %571 = vector.broadcast %570 : f32 to vector<4x128xf32>
    %572 = arith.mulf %571, %536 : vector<4x128xf32>
    %573 = arith.addf %568, %572 : vector<4x128xf32>
    %574 = arith.index_cast %c6_i32 : i32 to index
    %c3_119 = arith.constant 3 : index
    %575 = memref.load %arg1[%574, %c3_119] : memref<8x16xf32, #tpu.memory_space<smem>>
    %576 = vector.broadcast %575 : f32 to vector<4x128xf32>
    %577 = arith.mulf %576, %559 : vector<4x128xf32>
    %578 = arith.addf %573, %577 : vector<4x128xf32>
    %579 = arith.index_cast %c6_i32 : i32 to index
    %c0_120 = arith.constant 0 : index
    %580 = memref.load %arg2[%579, %c0_120] : memref<8x4xf32, #tpu.memory_space<smem>>
    %581 = vector.broadcast %580 : f32 to vector<4x128xf32>
    %582 = arith.addf %578, %581 : vector<4x128xf32>
    %583 = arith.index_cast %c6_i32 : i32 to index
    %c4_121 = arith.constant 4 : index
    %584 = memref.load %arg1[%583, %c4_121] : memref<8x16xf32, #tpu.memory_space<smem>>
    %585 = vector.broadcast %584 : f32 to vector<4x128xf32>
    %586 = arith.mulf %585, %490 : vector<4x128xf32>
    %587 = arith.index_cast %c6_i32 : i32 to index
    %c5_122 = arith.constant 5 : index
    %588 = memref.load %arg1[%587, %c5_122] : memref<8x16xf32, #tpu.memory_space<smem>>
    %589 = vector.broadcast %588 : f32 to vector<4x128xf32>
    %590 = arith.mulf %589, %513 : vector<4x128xf32>
    %591 = arith.addf %586, %590 : vector<4x128xf32>
    %592 = arith.index_cast %c6_i32 : i32 to index
    %c6_123 = arith.constant 6 : index
    %593 = memref.load %arg1[%592, %c6_123] : memref<8x16xf32, #tpu.memory_space<smem>>
    %594 = vector.broadcast %593 : f32 to vector<4x128xf32>
    %595 = arith.mulf %594, %536 : vector<4x128xf32>
    %596 = arith.addf %591, %595 : vector<4x128xf32>
    %597 = arith.index_cast %c6_i32 : i32 to index
    %c7_124 = arith.constant 7 : index
    %598 = memref.load %arg1[%597, %c7_124] : memref<8x16xf32, #tpu.memory_space<smem>>
    %599 = vector.broadcast %598 : f32 to vector<4x128xf32>
    %600 = arith.mulf %599, %559 : vector<4x128xf32>
    %601 = arith.addf %596, %600 : vector<4x128xf32>
    %602 = arith.index_cast %c6_i32 : i32 to index
    %c1_125 = arith.constant 1 : index
    %603 = memref.load %arg2[%602, %c1_125] : memref<8x4xf32, #tpu.memory_space<smem>>
    %604 = vector.broadcast %603 : f32 to vector<4x128xf32>
    %605 = arith.addf %601, %604 : vector<4x128xf32>
    %606 = arith.index_cast %c6_i32 : i32 to index
    %c8_126 = arith.constant 8 : index
    %607 = memref.load %arg1[%606, %c8_126] : memref<8x16xf32, #tpu.memory_space<smem>>
    %608 = vector.broadcast %607 : f32 to vector<4x128xf32>
    %609 = arith.mulf %608, %490 : vector<4x128xf32>
    %610 = arith.index_cast %c6_i32 : i32 to index
    %c9_127 = arith.constant 9 : index
    %611 = memref.load %arg1[%610, %c9_127] : memref<8x16xf32, #tpu.memory_space<smem>>
    %612 = vector.broadcast %611 : f32 to vector<4x128xf32>
    %613 = arith.mulf %612, %513 : vector<4x128xf32>
    %614 = arith.addf %609, %613 : vector<4x128xf32>
    %615 = arith.index_cast %c6_i32 : i32 to index
    %c10_128 = arith.constant 10 : index
    %616 = memref.load %arg1[%615, %c10_128] : memref<8x16xf32, #tpu.memory_space<smem>>
    %617 = vector.broadcast %616 : f32 to vector<4x128xf32>
    %618 = arith.mulf %617, %536 : vector<4x128xf32>
    %619 = arith.addf %614, %618 : vector<4x128xf32>
    %620 = arith.index_cast %c6_i32 : i32 to index
    %c11_129 = arith.constant 11 : index
    %621 = memref.load %arg1[%620, %c11_129] : memref<8x16xf32, #tpu.memory_space<smem>>
    %622 = vector.broadcast %621 : f32 to vector<4x128xf32>
    %623 = arith.mulf %622, %559 : vector<4x128xf32>
    %624 = arith.addf %619, %623 : vector<4x128xf32>
    %625 = arith.index_cast %c6_i32 : i32 to index
    %c2_130 = arith.constant 2 : index
    %626 = memref.load %arg2[%625, %c2_130] : memref<8x4xf32, #tpu.memory_space<smem>>
    %627 = vector.broadcast %626 : f32 to vector<4x128xf32>
    %628 = arith.addf %624, %627 : vector<4x128xf32>
    %629 = arith.index_cast %c6_i32 : i32 to index
    %c12_131 = arith.constant 12 : index
    %630 = memref.load %arg1[%629, %c12_131] : memref<8x16xf32, #tpu.memory_space<smem>>
    %631 = vector.broadcast %630 : f32 to vector<4x128xf32>
    %632 = arith.mulf %631, %490 : vector<4x128xf32>
    %633 = arith.index_cast %c6_i32 : i32 to index
    %c13_132 = arith.constant 13 : index
    %634 = memref.load %arg1[%633, %c13_132] : memref<8x16xf32, #tpu.memory_space<smem>>
    %635 = vector.broadcast %634 : f32 to vector<4x128xf32>
    %636 = arith.mulf %635, %513 : vector<4x128xf32>
    %637 = arith.addf %632, %636 : vector<4x128xf32>
    %638 = arith.index_cast %c6_i32 : i32 to index
    %c14_133 = arith.constant 14 : index
    %639 = memref.load %arg1[%638, %c14_133] : memref<8x16xf32, #tpu.memory_space<smem>>
    %640 = vector.broadcast %639 : f32 to vector<4x128xf32>
    %641 = arith.mulf %640, %536 : vector<4x128xf32>
    %642 = arith.addf %637, %641 : vector<4x128xf32>
    %643 = arith.index_cast %c6_i32 : i32 to index
    %c15_134 = arith.constant 15 : index
    %644 = memref.load %arg1[%643, %c15_134] : memref<8x16xf32, #tpu.memory_space<smem>>
    %645 = vector.broadcast %644 : f32 to vector<4x128xf32>
    %646 = arith.mulf %645, %559 : vector<4x128xf32>
    %647 = arith.addf %642, %646 : vector<4x128xf32>
    %648 = arith.index_cast %c6_i32 : i32 to index
    %c3_135 = arith.constant 3 : index
    %649 = memref.load %arg2[%648, %c3_135] : memref<8x4xf32, #tpu.memory_space<smem>>
    %650 = vector.broadcast %649 : f32 to vector<4x128xf32>
    %651 = arith.addf %647, %650 : vector<4x128xf32>
    %c7_i32 = arith.constant 7 : i32
    %652 = arith.index_cast %c7_i32 : i32 to index
    %c0_136 = arith.constant 0 : index
    %653 = memref.load %arg1[%652, %c0_136] : memref<8x16xf32, #tpu.memory_space<smem>>
    %654 = vector.broadcast %653 : f32 to vector<4x128xf32>
    %655 = arith.mulf %654, %582 : vector<4x128xf32>
    %656 = arith.index_cast %c7_i32 : i32 to index
    %c1_137 = arith.constant 1 : index
    %657 = memref.load %arg1[%656, %c1_137] : memref<8x16xf32, #tpu.memory_space<smem>>
    %658 = vector.broadcast %657 : f32 to vector<4x128xf32>
    %659 = arith.mulf %658, %605 : vector<4x128xf32>
    %660 = arith.addf %655, %659 : vector<4x128xf32>
    %661 = arith.index_cast %c7_i32 : i32 to index
    %c2_138 = arith.constant 2 : index
    %662 = memref.load %arg1[%661, %c2_138] : memref<8x16xf32, #tpu.memory_space<smem>>
    %663 = vector.broadcast %662 : f32 to vector<4x128xf32>
    %664 = arith.mulf %663, %628 : vector<4x128xf32>
    %665 = arith.addf %660, %664 : vector<4x128xf32>
    %666 = arith.index_cast %c7_i32 : i32 to index
    %c3_139 = arith.constant 3 : index
    %667 = memref.load %arg1[%666, %c3_139] : memref<8x16xf32, #tpu.memory_space<smem>>
    %668 = vector.broadcast %667 : f32 to vector<4x128xf32>
    %669 = arith.mulf %668, %651 : vector<4x128xf32>
    %670 = arith.addf %665, %669 : vector<4x128xf32>
    %671 = arith.index_cast %c7_i32 : i32 to index
    %c0_140 = arith.constant 0 : index
    %672 = memref.load %arg2[%671, %c0_140] : memref<8x4xf32, #tpu.memory_space<smem>>
    %673 = vector.broadcast %672 : f32 to vector<4x128xf32>
    %674 = arith.addf %670, %673 : vector<4x128xf32>
    %675 = arith.index_cast %c7_i32 : i32 to index
    %c4_141 = arith.constant 4 : index
    %676 = memref.load %arg1[%675, %c4_141] : memref<8x16xf32, #tpu.memory_space<smem>>
    %677 = vector.broadcast %676 : f32 to vector<4x128xf32>
    %678 = arith.mulf %677, %582 : vector<4x128xf32>
    %679 = arith.index_cast %c7_i32 : i32 to index
    %c5_142 = arith.constant 5 : index
    %680 = memref.load %arg1[%679, %c5_142] : memref<8x16xf32, #tpu.memory_space<smem>>
    %681 = vector.broadcast %680 : f32 to vector<4x128xf32>
    %682 = arith.mulf %681, %605 : vector<4x128xf32>
    %683 = arith.addf %678, %682 : vector<4x128xf32>
    %684 = arith.index_cast %c7_i32 : i32 to index
    %c6_143 = arith.constant 6 : index
    %685 = memref.load %arg1[%684, %c6_143] : memref<8x16xf32, #tpu.memory_space<smem>>
    %686 = vector.broadcast %685 : f32 to vector<4x128xf32>
    %687 = arith.mulf %686, %628 : vector<4x128xf32>
    %688 = arith.addf %683, %687 : vector<4x128xf32>
    %689 = arith.index_cast %c7_i32 : i32 to index
    %c7_144 = arith.constant 7 : index
    %690 = memref.load %arg1[%689, %c7_144] : memref<8x16xf32, #tpu.memory_space<smem>>
    %691 = vector.broadcast %690 : f32 to vector<4x128xf32>
    %692 = arith.mulf %691, %651 : vector<4x128xf32>
    %693 = arith.addf %688, %692 : vector<4x128xf32>
    %694 = arith.index_cast %c7_i32 : i32 to index
    %c1_145 = arith.constant 1 : index
    %695 = memref.load %arg2[%694, %c1_145] : memref<8x4xf32, #tpu.memory_space<smem>>
    %696 = vector.broadcast %695 : f32 to vector<4x128xf32>
    %697 = arith.addf %693, %696 : vector<4x128xf32>
    %698 = arith.index_cast %c7_i32 : i32 to index
    %c8_146 = arith.constant 8 : index
    %699 = memref.load %arg1[%698, %c8_146] : memref<8x16xf32, #tpu.memory_space<smem>>
    %700 = vector.broadcast %699 : f32 to vector<4x128xf32>
    %701 = arith.mulf %700, %582 : vector<4x128xf32>
    %702 = arith.index_cast %c7_i32 : i32 to index
    %c9_147 = arith.constant 9 : index
    %703 = memref.load %arg1[%702, %c9_147] : memref<8x16xf32, #tpu.memory_space<smem>>
    %704 = vector.broadcast %703 : f32 to vector<4x128xf32>
    %705 = arith.mulf %704, %605 : vector<4x128xf32>
    %706 = arith.addf %701, %705 : vector<4x128xf32>
    %707 = arith.index_cast %c7_i32 : i32 to index
    %c10_148 = arith.constant 10 : index
    %708 = memref.load %arg1[%707, %c10_148] : memref<8x16xf32, #tpu.memory_space<smem>>
    %709 = vector.broadcast %708 : f32 to vector<4x128xf32>
    %710 = arith.mulf %709, %628 : vector<4x128xf32>
    %711 = arith.addf %706, %710 : vector<4x128xf32>
    %712 = arith.index_cast %c7_i32 : i32 to index
    %c11_149 = arith.constant 11 : index
    %713 = memref.load %arg1[%712, %c11_149] : memref<8x16xf32, #tpu.memory_space<smem>>
    %714 = vector.broadcast %713 : f32 to vector<4x128xf32>
    %715 = arith.mulf %714, %651 : vector<4x128xf32>
    %716 = arith.addf %711, %715 : vector<4x128xf32>
    %717 = arith.index_cast %c7_i32 : i32 to index
    %c2_150 = arith.constant 2 : index
    %718 = memref.load %arg2[%717, %c2_150] : memref<8x4xf32, #tpu.memory_space<smem>>
    %719 = vector.broadcast %718 : f32 to vector<4x128xf32>
    %720 = arith.addf %716, %719 : vector<4x128xf32>
    %721 = arith.index_cast %c7_i32 : i32 to index
    %c12_151 = arith.constant 12 : index
    %722 = memref.load %arg1[%721, %c12_151] : memref<8x16xf32, #tpu.memory_space<smem>>
    %723 = vector.broadcast %722 : f32 to vector<4x128xf32>
    %724 = arith.mulf %723, %582 : vector<4x128xf32>
    %725 = arith.index_cast %c7_i32 : i32 to index
    %c13_152 = arith.constant 13 : index
    %726 = memref.load %arg1[%725, %c13_152] : memref<8x16xf32, #tpu.memory_space<smem>>
    %727 = vector.broadcast %726 : f32 to vector<4x128xf32>
    %728 = arith.mulf %727, %605 : vector<4x128xf32>
    %729 = arith.addf %724, %728 : vector<4x128xf32>
    %730 = arith.index_cast %c7_i32 : i32 to index
    %c14_153 = arith.constant 14 : index
    %731 = memref.load %arg1[%730, %c14_153] : memref<8x16xf32, #tpu.memory_space<smem>>
    %732 = vector.broadcast %731 : f32 to vector<4x128xf32>
    %733 = arith.mulf %732, %628 : vector<4x128xf32>
    %734 = arith.addf %729, %733 : vector<4x128xf32>
    %735 = arith.index_cast %c7_i32 : i32 to index
    %c15_154 = arith.constant 15 : index
    %736 = memref.load %arg1[%735, %c15_154] : memref<8x16xf32, #tpu.memory_space<smem>>
    %737 = vector.broadcast %736 : f32 to vector<4x128xf32>
    %738 = arith.mulf %737, %651 : vector<4x128xf32>
    %739 = arith.addf %734, %738 : vector<4x128xf32>
    %740 = arith.index_cast %c7_i32 : i32 to index
    %c3_155 = arith.constant 3 : index
    %741 = memref.load %arg2[%740, %c3_155] : memref<8x4xf32, #tpu.memory_space<smem>>
    %742 = vector.broadcast %741 : f32 to vector<4x128xf32>
    %743 = arith.addf %739, %742 : vector<4x128xf32>
    %c8_i32 = arith.constant 8 : i32
    %cst = arith.constant -1.000000e+00 : f32
    %cst_156 = arith.constant 1.000000e+00 : f32
    %744 = vector.broadcast %cst : f32 to vector<4x128xf32>
    %745 = arith.maximumf %744, %674 : vector<4x128xf32>
    %746 = vector.broadcast %cst_156 : f32 to vector<4x128xf32>
    %747 = arith.minimumf %746, %745 : vector<4x128xf32>
    %c0_157 = arith.constant 0 : index
    %c0_158 = arith.constant 0 : index
    %c0_159 = arith.constant 0 : index
    %748 = vector.load %arg4[%c0_157, %c0_158, %c0_159] : memref<4x4x128xf32, #tpu.memory_space<vmem>>, vector<1x4x128xf32>
    %749 = vector.shape_cast %748 : vector<1x4x128xf32> to vector<4x128xf32>
    %750 = vector.shape_cast %747 : vector<4x128xf32> to vector<1x4x128xf32>
    tpu.vector_store %arg4[%c0_157, %c0_158, %c0_159], %750 {strides = array<i32>} : memref<4x4x128xf32, #tpu.memory_space<vmem>>, vector<1x4x128xf32>,
    %cst_160 = arith.constant -1.000000e+00 : f32
    %cst_161 = arith.constant 1.000000e+00 : f32
    %751 = vector.broadcast %cst_160 : f32 to vector<4x128xf32>
    %752 = arith.maximumf %751, %697 : vector<4x128xf32>
    %753 = vector.broadcast %cst_161 : f32 to vector<4x128xf32>
    %754 = arith.minimumf %753, %752 : vector<4x128xf32>
    %c1_162 = arith.constant 1 : index
    %c0_163 = arith.constant 0 : index
    %c0_164 = arith.constant 0 : index
    %755 = vector.load %arg4[%c1_162, %c0_163, %c0_164] : memref<4x4x128xf32, #tpu.memory_space<vmem>>, vector<1x4x128xf32>
    %756 = vector.shape_cast %755 : vector<1x4x128xf32> to vector<4x128xf32>
    %757 = vector.shape_cast %754 : vector<4x128xf32> to vector<1x4x128xf32>
    tpu.vector_store %arg4[%c1_162, %c0_163, %c0_164], %757 {strides = array<i32>} : memref<4x4x128xf32, #tpu.memory_space<vmem>>, vector<1x4x128xf32>,
    %cst_165 = arith.constant -1.000000e+00 : f32
    %cst_166 = arith.constant 1.000000e+00 : f32
    %758 = vector.broadcast %cst_165 : f32 to vector<4x128xf32>
    %759 = arith.maximumf %758, %720 : vector<4x128xf32>
    %760 = vector.broadcast %cst_166 : f32 to vector<4x128xf32>
    %761 = arith.minimumf %760, %759 : vector<4x128xf32>
    %c2_167 = arith.constant 2 : index
    %c0_168 = arith.constant 0 : index
    %c0_169 = arith.constant 0 : index
    %762 = vector.load %arg4[%c2_167, %c0_168, %c0_169] : memref<4x4x128xf32, #tpu.memory_space<vmem>>, vector<1x4x128xf32>
    %763 = vector.shape_cast %762 : vector<1x4x128xf32> to vector<4x128xf32>
    %764 = vector.shape_cast %761 : vector<4x128xf32> to vector<1x4x128xf32>
    tpu.vector_store %arg4[%c2_167, %c0_168, %c0_169], %764 {strides = array<i32>} : memref<4x4x128xf32, #tpu.memory_space<vmem>>, vector<1x4x128xf32>,
    %cst_170 = arith.constant -1.000000e+00 : f32
    %cst_171 = arith.constant 1.000000e+00 : f32
    %765 = vector.broadcast %cst_170 : f32 to vector<4x128xf32>
    %766 = arith.maximumf %765, %743 : vector<4x128xf32>
    %767 = vector.broadcast %cst_171 : f32 to vector<4x128xf32>
    %768 = arith.minimumf %767, %766 : vector<4x128xf32>
    %c3_172 = arith.constant 3 : index
    %c0_173 = arith.constant 0 : index
    %c0_174 = arith.constant 0 : index
    %769 = vector.load %arg4[%c3_172, %c0_173, %c0_174] : memref<4x4x128xf32, #tpu.memory_space<vmem>>, vector<1x4x128xf32>
    %770 = vector.shape_cast %769 : vector<1x4x128xf32> to vector<4x128xf32>
    %771 = vector.shape_cast %768 : vector<4x128xf32> to vector<1x4x128xf32>
    tpu.vector_store %arg4[%c3_172, %c0_173, %c0_174], %771 {strides = array<i32>} : memref<4x4x128xf32, #tpu.memory_space<vmem>>, vector<1x4x128xf32>,
    return
  }
  func.func @transform_0(%arg0: i32) -> (i32, i32) {
    %c0_i32 = arith.constant 0 : i32
    %c0_i32_0 = arith.constant 0 : i32
    %c0_i32_1 = arith.constant 0 : i32
    return %c0_i32, %c0_i32_0 : i32, i32
  }
  func.func @transform_1(%arg0: i32) -> (i32, i32) {
    %c0_i32 = arith.constant 0 : i32
    %c0_i32_0 = arith.constant 0 : i32
    %c0_i32_1 = arith.constant 0 : i32
    return %c0_i32, %c0_i32_0 : i32, i32
  }
  func.func @transform_2(%arg0: i32) -> (i32, i32, i32) {
    %c0_i32 = arith.constant 0 : i32
    %c0_i32_0 = arith.constant 0 : i32
    %c0_i32_1 = arith.constant 0 : i32
    return %c0_i32, %arg0, %c0_i32_0 : i32, i32, i32
  }
  func.func @transform_3(%arg0: i32) -> (i32, i32, i32) {
    %c0_i32 = arith.constant 0 : i32
    %c0_i32_0 = arith.constant 0 : i32
    %c0_i32_1 = arith.constant 0 : i32
    return %c0_i32, %arg0, %c0_i32_0 : i32, i32, i32
  }
}

</mosaic_0001>

<llo_original>
// kernel: _ddim_core_final.1
$region0: #{_ddim_core_final.1}
  #allocation0 [shape = 'u32[]', space=smem, size = 0x4, offset = 0x4, fixed_abs, tag = 'smem constant byte address 0x4 - core index']
  #allocation1 [shape = 'u32[144,128]{1,0:T(1,128)}', space=vmem, size = 0x12000, scoped, tag = 'internal scratch']
  %s0 = inlined_call_operand.vmem [shape: f32[8,16], index: 0, kind: input, shape index: {}]
  %s1 = inlined_call_operand.vmem [shape: f32[8,4], index: 1, kind: input, shape index: {}]
  %s2 = inlined_call_operand.vmem [shape: f32[4,4,128], index: 2, kind: input, shape index: {}, may-alias: {2,3}]
  %s3 = inlined_call_operand.vmem [shape: f32[4,4,128], index: 3, kind: output, shape index: {}, may-alias: {2,3}]
  %s4 = sld [smem:[#allocation0]]
  $region30: #{_ddim_core_final.1} parent=0
    _
  %s6 = ssub.s32 1, %s4
  %s7 = scalar_select 0, %s6, %s4
  $region1: #{_ddim_core_final.1} parent=0
    #allocation2 [shape = 'u8[4096]{0}', space=smem, size = 0x1000, scoped, tag = 'input window, operand 0, single buffered']
    #allocation3 [shape = 's32[1]{0}', space=sflag, size = 0x4, scoped, tag = 'scoped memory for _ddim_core_final.1']
    #allocation4 [shape = 'u8[4096]{0}', space=smem, size = 0x1000, scoped, tag = 'input window, operand 1, single buffered']
    #allocation5 [shape = 's32[1]{0}', space=sflag, size = 0x4, scoped, tag = 'scoped memory for _ddim_core_final.1']
    %8 = vsyncpa [#allocation3], 0
    %9 = vsyncpa [#allocation5], 0
    // Predicated region
    $region2: #{_ddim_core_final.1} parent=1 // pred_check
      _
    $region3: #{_ddim_core_final.1} parent=1 // pred_check_branch
      %11 = sbr.rel (0) target = $region5
    $region4: #{_ddim_core_final.1} parent=1 // pred_region
      %s13 = ssub.s32 128, 128
      %14 = vsyncadd [#allocation3], %s13
      %s16 = sshll.u32 %s0, 4
      %s17 = int_to_ptr.vmem [resolvable:$true] %s16
      %19 = dma.vmem_to_smem %s17, 128, [#allocation2], [#allocation3]
    $region5: #{_ddim_core_final.1} parent=1 // pred_fallthru
      _
    // Predicated region
    $region6: #{_ddim_core_final.1} parent=1 // pred_check
      _
    $region7: #{_ddim_core_final.1} parent=1 // pred_check_branch
      %21 = sbr.rel (0) target = $region9
    $region8: #{_ddim_core_final.1} parent=1 // pred_region
      %s23 = ssub.s32 128, 128
      %24 = vsyncadd [#allocation5], %s23
      %s26 = sshll.u32 %s1, 4
      %s27 = int_to_ptr.vmem [resolvable:$true] %s26
      %29 = dma.vmem_to_smem %s27, 128, [#allocation4], [#allocation5]
    $region9: #{_ddim_core_final.1} parent=1 // pred_fallthru
      _
    // Predicated region
    $region10: #{_ddim_core_final.1} parent=1 // pred_check
      _
    $region11: #{_ddim_core_final.1} parent=1 // pred_check_branch
      %31 = sbr.rel (0) target = $region13
    $region12: #{_ddim_core_final.1} parent=1 // pred_region
      _
    $region13: #{_ddim_core_final.1} parent=1 // pred_fallthru
      _
    // Predicated region
    $region14: #{_ddim_core_final.1} parent=1 // pred_check
      _
    $region15: #{_ddim_core_final.1} parent=1 // pred_check_branch
      %33 = sbr.rel (0) target = $region17
    $region16: #{_ddim_core_final.1} parent=1 // pred_region
      %34 = dma.done [#allocation3], 128
    $region17: #{_ddim_core_final.1} parent=1 // pred_fallthru
      _
    // Predicated region
    $region18: #{_ddim_core_final.1} parent=1 // pred_check
      _
    $region19: #{_ddim_core_final.1} parent=1 // pred_check_branch
      %36 = sbr.rel (0) target = $region21
    $region20: #{_ddim_core_final.1} parent=1 // pred_region
      %37 = dma.done [#allocation5], 128
    $region21: #{_ddim_core_final.1} parent=1 // pred_fallthru
      _
    %38 = sfence
    %v39 = vld [vmem:[%s2] sm:$0xf]
    %s40 = scalar_lea.vmem %s2, 4
    %v41 = vld [vmem:[%s40] sm:$0xf]
    %s42 = scalar_lea.vmem %s2, 8
    %v43 = vld [vmem:[%s42] sm:$0xf]
    %s44 = scalar_lea.vmem %s2, 12
    %v45 = vld [vmem:[%s44] sm:$0xf]
    %s46 = sld [smem:[#allocation2]]
    %v47 = vstv %s46
    %v48 = vmul.f32 %v47, %v39
    %s49 = sld [smem:[#allocation2 + $0x1]]
    %v50 = vstv %s49
    %v51 = vmul.f32 %v50, %v41
    %v52 = vadd.f32 %v48, %v51
    %s53 = sld [smem:[#allocation2 + $0x2]]
    %v54 = vstv %s53
    %v55 = vmul.f32 %v54, %v43
    %v56 = vadd.f32 %v52, %v55
    %s57 = sld [smem:[#allocation2 + $0x3]]
    %v58 = vstv %s57
    %v59 = vmul.f32 %v58, %v45
    %v60 = vadd.f32 %v56, %v59
    %s61 = sld [smem:[#allocation4]]
    %v62 = vstv %s61
    %v63 = vadd.f32 %v60, %v62
    %s64 = sld [smem:[#allocation2 + $0x4]]
    %v65 = vstv %s64
    %v66 = vmul.f32 %v65, %v39
    %s67 = sld [smem:[#allocation2 + $0x5]]
    %v68 = vstv %s67
    %v69 = vmul.f32 %v68, %v41
    %v70 = vadd.f32 %v66, %v69
    %s71 = sld [smem:[#allocation2 + $0x6]]
    %v72 = vstv %s71
    %v73 = vmul.f32 %v72, %v43
    %v74 = vadd.f32 %v70, %v73
    %s75 = sld [smem:[#allocation2 + $0x7]]
    %v76 = vstv %s75
    %v77 = vmul.f32 %v76, %v45
    %v78 = vadd.f32 %v74, %v77
    %s79 = sld [smem:[#allocation4 + $0x1]]
    %v80 = vstv %s79
    %v81 = vadd.f32 %v78, %v80
    %s82 = sld [smem:[#allocation2 + $0x8]]
    %v83 = vstv %s82
    %v84 = vmul.f32 %v83, %v39
    %s85 = sld [smem:[#allocation2 + $0x9]]
    %v86 = vstv %s85
    %v87 = vmul.f32 %v86, %v41
    %v88 = vadd.f32 %v84, %v87
    %s89 = sld [smem:[#allocation2 + $0xa]]
    %v90 = vstv %s89
    %v91 = vmul.f32 %v90, %v43
    %v92 = vadd.f32 %v88, %v91
    %s93 = sld [smem:[#allocation2 + $0xb]]
    %v94 = vstv %s93
    %v95 = vmul.f32 %v94, %v45
    %v96 = vadd.f32 %v92, %v95
    %s97 = sld [smem:[#allocation4 + $0x2]]
    %v98 = vstv %s97
    %v99 = vadd.f32 %v96, %v98
    %s100 = sld [smem:[#allocation2 + $0xc]]
    %v101 = vstv %s100
    %v102 = vmul.f32 %v101, %v39
    %s103 = sld [smem:[#allocation2 + $0xd]]
    %v104 = vstv %s103
    %v105 = vmul.f32 %v104, %v41
    %v106 = vadd.f32 %v102, %v105
    %s107 = sld [smem:[#allocation2 + $0xe]]
    %v108 = vstv %s107
    %v109 = vmul.f32 %v108, %v43
    %v110 = vadd.f32 %v106, %v109
    %s111 = sld [smem:[#allocation2 + $0xf]]
    %v112 = vstv %s111
    %v113 = vmul.f32 %v112, %v45
    %v114 = vadd.f32 %v110, %v113
    %s115 = sld [smem:[#allocation4 + $0x3]]
    %v116 = vstv %s115
    %v117 = vadd.f32 %v114, %v116
    %s118 = sld [smem:[#allocation2 + $0x80]]
    %v119 = vstv %s118
    %v120 = vmul.f32 %v119, %v63
    %s121 = sld [smem:[#allocation2 + $0x81]]
    %v122 = vstv %s121
    %v123 = vmul.f32 %v122, %v81
    %v124 = vadd.f32 %v120, %v123
    %s125 = sld [smem:[#allocation2 + $0x82]]
    %v126 = vstv %s125
    %v127 = vmul.f32 %v126, %v99
    %v128 = vadd.f32 %v124, %v127
    %s129 = sld [smem:[#allocation2 + $0x83]]
    %v130 = vstv %s129
    %v131 = vmul.f32 %v130, %v117
    %v132 = vadd.f32 %v128, %v131
    %s133 = sld [smem:[#allocation4 + $0x80]]
    %v134 = vstv %s133
    %v135 = vadd.f32 %v132, %v134
    %s136 = sld [smem:[#allocation2 + $0x84]]
    %v137 = vstv %s136
    %v138 = vmul.f32 %v137, %v63
    %s139 = sld [smem:[#allocation2 + $0x85]]
    %v140 = vstv %s139
    %v141 = vmul.f32 %v140, %v81
    %v142 = vadd.f32 %v138, %v141
    %s143 = sld [smem:[#allocation2 + $0x86]]
    %v144 = vstv %s143
    %v145 = vmul.f32 %v144, %v99
    %v146 = vadd.f32 %v142, %v145
    %s147 = sld [smem:[#allocation2 + $0x87]]
    %v148 = vstv %s147
    %v149 = vmul.f32 %v148, %v117
    %v150 = vadd.f32 %v146, %v149
    %s151 = sld [smem:[#allocation4 + $0x81]]
    %v152 = vstv %s151
    %v153 = vadd.f32 %v150, %v152
    %s154 = sld [smem:[#allocation2 + $0x88]]
    %v155 = vstv %s154
    %v156 = vmul.f32 %v155, %v63
    %s157 = sld [smem:[#allocation2 + $0x89]]
    %v158 = vstv %s157
    %v159 = vmul.f32 %v158, %v81
    %v160 = vadd.f32 %v156, %v159
    %s161 = sld [smem:[#allocation2 + $0x8a]]
    %v162 = vstv %s161
    %v163 = vmul.f32 %v162, %v99
    %v164 = vadd.f32 %v160, %v163
    %s165 = sld [smem:[#allocation2 + $0x8b]]
    %v166 = vstv %s165
    %v167 = vmul.f32 %v166, %v117
    %v168 = vadd.f32 %v164, %v167
    %s169 = sld [smem:[#allocation4 + $0x82]]
    %v170 = vstv %s169
    %v171 = vadd.f32 %v168, %v170
    %s172 = sld [smem:[#allocation2 + $0x8c]]
    %v173 = vstv %s172
    %v174 = vmul.f32 %v173, %v63
    %s175 = sld [smem:[#allocation2 + $0x8d]]
    %v176 = vstv %s175
    %v177 = vmul.f32 %v176, %v81
    %v178 = vadd.f32 %v174, %v177
    %s179 = sld [smem:[#allocation2 + $0x8e]]
    %v180 = vstv %s179
    %v181 = vmul.f32 %v180, %v99
    %v182 = vadd.f32 %v178, %v181
    %s183 = sld [smem:[#allocation2 + $0x8f]]
    %v184 = vstv %s183
    %v185 = vmul.f32 %v184, %v117
    %v186 = vadd.f32 %v182, %v185
    %s187 = sld [smem:[#allocation4 + $0x83]]
    %v188 = vstv %s187
    %v189 = vadd.f32 %v186, %v188
    %s190 = sld [smem:[#allocation2 + $0x100]]
    %v191 = vstv %s190
    %v192 = vmul.f32 %v191, %v135
    %s193 = sld [smem:[#allocation2 + $0x101]]
    %v194 = vstv %s193
    %v195 = vmul.f32 %v194, %v153
    %v196 = vadd.f32 %v192, %v195
    %s197 = sld [smem:[#allocation2 + $0x102]]
    %v198 = vstv %s197
    %v199 = vmul.f32 %v198, %v171
    %v200 = vadd.f32 %v196, %v199
    %s201 = sld [smem:[#allocation2 + $0x103]]
    %v202 = vstv %s201
    %v203 = vmul.f32 %v202, %v189
    %v204 = vadd.f32 %v200, %v203
    %s205 = sld [smem:[#allocation4 + $0x100]]
    %v206 = vstv %s205
    %v207 = vadd.f32 %v204, %v206
    %s208 = sld [smem:[#allocation2 + $0x104]]
    %v209 = vstv %s208
    %v210 = vmul.f32 %v209, %v135
    %s211 = sld [smem:[#allocation2 + $0x105]]
    %v212 = vstv %s211
    %v213 = vmul.f32 %v212, %v153
    %v214 = vadd.f32 %v210, %v213
    %s215 = sld [smem:[#allocation2 + $0x106]]
    %v216 = vstv %s215
    %v217 = vmul.f32 %v216, %v171
    %v218 = vadd.f32 %v214, %v217
    %s219 = sld [smem:[#allocation2 + $0x107]]
    %v220 = vstv %s219
    %v221 = vmul.f32 %v220, %v189
    %v222 = vadd.f32 %v218, %v221
    %s223 = sld [smem:[#allocation4 + $0x101]]
    %v224 = vstv %s223
    %v225 = vadd.f32 %v222, %v224
    %s226 = sld [smem:[#allocation2 + $0x108]]
    %v227 = vstv %s226
    %v228 = vmul.f32 %v227, %v135
    %s229 = sld [smem:[#allocation2 + $0x109]]
    %v230 = vstv %s229
    %v231 = vmul.f32 %v230, %v153
    %v232 = vadd.f32 %v228, %v231
    %s233 = sld [smem:[#allocation2 + $0x10a]]
    %v234 = vstv %s233
    %v235 = vmul.f32 %v234, %v171
    %v236 = vadd.f32 %v232, %v235
    %s237 = sld [smem:[#allocation2 + $0x10b]]
    %v238 = vstv %s237
    %v239 = vmul.f32 %v238, %v189
    %v240 = vadd.f32 %v236, %v239
    %s241 = sld [smem:[#allocation4 + $0x102]]
    %v242 = vstv %s241
    %v243 = vadd.f32 %v240, %v242
    %s244 = sld [smem:[#allocation2 + $0x10c]]
    %v245 = vstv %s244
    %v246 = vmul.f32 %v245, %v135
    %s247 = sld [smem:[#allocation2 + $0x10d]]
    %v248 = vstv %s247
    %v249 = vmul.f32 %v248, %v153
    %v250 = vadd.f32 %v246, %v249
    %s251 = sld [smem:[#allocation2 + $0x10e]]
    %v252 = vstv %s251
    %v253 = vmul.f32 %v252, %v171
    %v254 = vadd.f32 %v250, %v253
    %s255 = sld [smem:[#allocation2 + $0x10f]]
    %v256 = vstv %s255
    %v257 = vmul.f32 %v256, %v189
    %v258 = vadd.f32 %v254, %v257
    %s259 = sld [smem:[#allocation4 + $0x103]]
    %v260 = vstv %s259
    %v261 = vadd.f32 %v258, %v260
    %s262 = sld [smem:[#allocation2 + $0x180]]
    %v263 = vstv %s262
    %v264 = vmul.f32 %v263, %v207
    %s265 = sld [smem:[#allocation2 + $0x181]]
    %v266 = vstv %s265
    %v267 = vmul.f32 %v266, %v225
    %v268 = vadd.f32 %v264, %v267
    %s269 = sld [smem:[#allocation2 + $0x182]]
    %v270 = vstv %s269
    %v271 = vmul.f32 %v270, %v243
    %v272 = vadd.f32 %v268, %v271
    %s273 = sld [smem:[#allocation2 + $0x183]]
    %v274 = vstv %s273
    %v275 = vmul.f32 %v274, %v261
    %v276 = vadd.f32 %v272, %v275
    %s277 = sld [smem:[#allocation4 + $0x180]]
    %v278 = vstv %s277
    %v279 = vadd.f32 %v276, %v278
    %s280 = sld [smem:[#allocation2 + $0x184]]
    %v281 = vstv %s280
    %v282 = vmul.f32 %v281, %v207
    %s283 = sld [smem:[#allocation2 + $0x185]]
    %v284 = vstv %s283
    %v285 = vmul.f32 %v284, %v225
    %v286 = vadd.f32 %v282, %v285
    %s287 = sld [smem:[#allocation2 + $0x186]]
    %v288 = vstv %s287
    %v289 = vmul.f32 %v288, %v243
    %v290 = vadd.f32 %v286, %v289
    %s291 = sld [smem:[#allocation2 + $0x187]]
    %v292 = vstv %s291
    %v293 = vmul.f32 %v292, %v261
    %v294 = vadd.f32 %v290, %v293
    %s295 = sld [smem:[#allocation4 + $0x181]]
    %v296 = vstv %s295
    %v297 = vadd.f32 %v294, %v296
    %s298 = sld [smem:[#allocation2 + $0x188]]
    %v299 = vstv %s298
    %v300 = vmul.f32 %v299, %v207
    %s301 = sld [smem:[#allocation2 + $0x189]]
    %v302 = vstv %s301
    %v303 = vmul.f32 %v302, %v225
    %v304 = vadd.f32 %v300, %v303
    %s305 = sld [smem:[#allocation2 + $0x18a]]
    %v306 = vstv %s305
    %v307 = vmul.f32 %v306, %v243
    %v308 = vadd.f32 %v304, %v307
    %s309 = sld [smem:[#allocation2 + $0x18b]]
    %v310 = vstv %s309
    %v311 = vmul.f32 %v310, %v261
    %v312 = vadd.f32 %v308, %v311
    %s313 = sld [smem:[#allocation4 + $0x182]]
    %v314 = vstv %s313
    %v315 = vadd.f32 %v312, %v314
    %s316 = sld [smem:[#allocation2 + $0x18c]]
    %v317 = vstv %s316
    %v318 = vmul.f32 %v317, %v207
    %s319 = sld [smem:[#allocation2 + $0x18d]]
    %v320 = vstv %s319
    %v321 = vmul.f32 %v320, %v225
    %v322 = vadd.f32 %v318, %v321
    %s323 = sld [smem:[#allocation2 + $0x18e]]
    %v324 = vstv %s323
    %v325 = vmul.f32 %v324, %v243
    %v326 = vadd.f32 %v322, %v325
    %s327 = sld [smem:[#allocation2 + $0x18f]]
    %v328 = vstv %s327
    %v329 = vmul.f32 %v328, %v261
    %v330 = vadd.f32 %v326, %v329
    %s331 = sld [smem:[#allocation4 + $0x183]]
    %v332 = vstv %s331
    %v333 = vadd.f32 %v330, %v332
    %s334 = sld [smem:[#allocation2 + $0x200]]
    %v335 = vstv %s334
    %v336 = vmul.f32 %v335, %v279
    %s337 = sld [smem:[#allocation2 + $0x201]]
    %v338 = vstv %s337
    %v339 = vmul.f32 %v338, %v297
    %v340 = vadd.f32 %v336, %v339
    %s341 = sld [smem:[#allocation2 + $0x202]]
    %v342 = vstv %s341
    %v343 = vmul.f32 %v342, %v315
    %v344 = vadd.f32 %v340, %v343
    %s345 = sld [smem:[#allocation2 + $0x203]]
    %v346 = vstv %s345
    %v347 = vmul.f32 %v346, %v333
    %v348 = vadd.f32 %v344, %v347
    %s349 = sld [smem:[#allocation4 + $0x200]]
    %v350 = vstv %s349
    %v351 = vadd.f32 %v348, %v350
    %s352 = sld [smem:[#allocation2 + $0x204]]
    %v353 = vstv %s352
    %v354 = vmul.f32 %v353, %v279
    %s355 = sld [smem:[#allocation2 + $0x205]]
    %v356 = vstv %s355
    %v357 = vmul.f32 %v356, %v297
    %v358 = vadd.f32 %v354, %v357
    %s359 = sld [smem:[#allocation2 + $0x206]]
    %v360 = vstv %s359
    %v361 = vmul.f32 %v360, %v315
    %v362 = vadd.f32 %v358, %v361
    %s363 = sld [smem:[#allocation2 + $0x207]]
    %v364 = vstv %s363
    %v365 = vmul.f32 %v364, %v333
    %v366 = vadd.f32 %v362, %v365
    %s367 = sld [smem:[#allocation4 + $0x201]]
    %v368 = vstv %s367
    %v369 = vadd.f32 %v366, %v368
    %s370 = sld [smem:[#allocation2 + $0x208]]
    %v371 = vstv %s370
    %v372 = vmul.f32 %v371, %v279
    %s373 = sld [smem:[#allocation2 + $0x209]]
    %v374 = vstv %s373
    %v375 = vmul.f32 %v374, %v297
    %v376 = vadd.f32 %v372, %v375
    %s377 = sld [smem:[#allocation2 + $0x20a]]
    %v378 = vstv %s377
    %v379 = vmul.f32 %v378, %v315
    %v380 = vadd.f32 %v376, %v379
    %s381 = sld [smem:[#allocation2 + $0x20b]]
    %v382 = vstv %s381
    %v383 = vmul.f32 %v382, %v333
    %v384 = vadd.f32 %v380, %v383
    %s385 = sld [smem:[#allocation4 + $0x202]]
    %v386 = vstv %s385
    %v387 = vadd.f32 %v384, %v386
    %s388 = sld [smem:[#allocation2 + $0x20c]]
    %v389 = vstv %s388
    %v390 = vmul.f32 %v389, %v279
    %s391 = sld [smem:[#allocation2 + $0x20d]]
    %v392 = vstv %s391
    %v393 = vmul.f32 %v392, %v297
    %v394 = vadd.f32 %v390, %v393
    %s395 = sld [smem:[#allocation2 + $0x20e]]
    %v396 = vstv %s395
    %v397 = vmul.f32 %v396, %v315
    %v398 = vadd.f32 %v394, %v397
    %s399 = sld [smem:[#allocation2 + $0x20f]]
    %v400 = vstv %s399
    %v401 = vmul.f32 %v400, %v333
    %v402 = vadd.f32 %v398, %v401
    %s403 = sld [smem:[#allocation4 + $0x203]]
    %v404 = vstv %s403
    %v405 = vadd.f32 %v402, %v404
    %s406 = sld [smem:[#allocation2 + $0x280]]
    %v407 = vstv %s406
    %v408 = vmul.f32 %v407, %v351
    %s409 = sld [smem:[#allocation2 + $0x281]]
    %v410 = vstv %s409
    %v411 = vmul.f32 %v410, %v369
    %v412 = vadd.f32 %v408, %v411
    %s413 = sld [smem:[#allocation2 + $0x282]]
    %v414 = vstv %s413
    %v415 = vmul.f32 %v414, %v387
    %v416 = vadd.f32 %v412, %v415
    %s417 = sld [smem:[#allocation2 + $0x283]]
    %v418 = vstv %s417
    %v419 = vmul.f32 %v418, %v405
    %v420 = vadd.f32 %v416, %v419
    %s421 = sld [smem:[#allocation4 + $0x280]]
    %v422 = vstv %s421
    %v423 = vadd.f32 %v420, %v422
    %s424 = sld [smem:[#allocation2 + $0x284]]
    %v425 = vstv %s424
    %v426 = vmul.f32 %v425, %v351
    %s427 = sld [smem:[#allocation2 + $0x285]]
    %v428 = vstv %s427
    %v429 = vmul.f32 %v428, %v369
    %v430 = vadd.f32 %v426, %v429
    %s431 = sld [smem:[#allocation2 + $0x286]]
    %v432 = vstv %s431
    %v433 = vmul.f32 %v432, %v387
    %v434 = vadd.f32 %v430, %v433
    %s435 = sld [smem:[#allocation2 + $0x287]]
    %v436 = vstv %s435
    %v437 = vmul.f32 %v436, %v405
    %v438 = vadd.f32 %v434, %v437
    %s439 = sld [smem:[#allocation4 + $0x281]]
    %v440 = vstv %s439
    %v441 = vadd.f32 %v438, %v440
    %s442 = sld [smem:[#allocation2 + $0x288]]
    %v443 = vstv %s442
    %v444 = vmul.f32 %v443, %v351
    %s445 = sld [smem:[#allocation2 + $0x289]]
    %v446 = vstv %s445
    %v447 = vmul.f32 %v446, %v369
    %v448 = vadd.f32 %v444, %v447
    %s449 = sld [smem:[#allocation2 + $0x28a]]
    %v450 = vstv %s449
    %v451 = vmul.f32 %v450, %v387
    %v452 = vadd.f32 %v448, %v451
    %s453 = sld [smem:[#allocation2 + $0x28b]]
    %v454 = vstv %s453
    %v455 = vmul.f32 %v454, %v405
    %v456 = vadd.f32 %v452, %v455
    %s457 = sld [smem:[#allocation4 + $0x282]]
    %v458 = vstv %s457
    %v459 = vadd.f32 %v456, %v458
    %s460 = sld [smem:[#allocation2 + $0x28c]]
    %v461 = vstv %s460
    %v462 = vmul.f32 %v461, %v351
    %s463 = sld [smem:[#allocation2 + $0x28d]]
    %v464 = vstv %s463
    %v465 = vmul.f32 %v464, %v369
    %v466 = vadd.f32 %v462, %v465
    %s467 = sld [smem:[#allocation2 + $0x28e]]
    %v468 = vstv %s467
    %v469 = vmul.f32 %v468, %v387
    %v470 = vadd.f32 %v466, %v469
    %s471 = sld [smem:[#allocation2 + $0x28f]]
    %v472 = vstv %s471
    %v473 = vmul.f32 %v472, %v405
    %v474 = vadd.f32 %v470, %v473
    %s475 = sld [smem:[#allocation4 + $0x283]]
    %v476 = vstv %s475
    %v477 = vadd.f32 %v474, %v476
    %s478 = sld [smem:[#allocation2 + $0x300]]
    %v479 = vstv %s478
    %v480 = vmul.f32 %v479, %v423
    %s481 = sld [smem:[#allocation2 + $0x301]]
    %v482 = vstv %s481
    %v483 = vmul.f32 %v482, %v441
    %v484 = vadd.f32 %v480, %v483
    %s485 = sld [smem:[#allocation2 + $0x302]]
    %v486 = vstv %s485
    %v487 = vmul.f32 %v486, %v459
    %v488 = vadd.f32 %v484, %v487
    %s489 = sld [smem:[#allocation2 + $0x303]]
    %v490 = vstv %s489
    %v491 = vmul.f32 %v490, %v477
    %v492 = vadd.f32 %v488, %v491
    %s493 = sld [smem:[#allocation4 + $0x300]]
    %v494 = vstv %s493
    %v495 = vadd.f32 %v492, %v494
    %s496 = sld [smem:[#allocation2 + $0x304]]
    %v497 = vstv %s496
    %v498 = vmul.f32 %v497, %v423
    %s499 = sld [smem:[#allocation2 + $0x305]]
    %v500 = vstv %s499
    %v501 = vmul.f32 %v500, %v441
    %v502 = vadd.f32 %v498, %v501
    %s503 = sld [smem:[#allocation2 + $0x306]]
    %v504 = vstv %s503
    %v505 = vmul.f32 %v504, %v459
    %v506 = vadd.f32 %v502, %v505
    %s507 = sld [smem:[#allocation2 + $0x307]]
    %v508 = vstv %s507
    %v509 = vmul.f32 %v508, %v477
    %v510 = vadd.f32 %v506, %v509
    %s511 = sld [smem:[#allocation4 + $0x301]]
    %v512 = vstv %s511
    %v513 = vadd.f32 %v510, %v512
    %s514 = sld [smem:[#allocation2 + $0x308]]
    %v515 = vstv %s514
    %v516 = vmul.f32 %v515, %v423
    %s517 = sld [smem:[#allocation2 + $0x309]]
    %v518 = vstv %s517
    %v519 = vmul.f32 %v518, %v441
    %v520 = vadd.f32 %v516, %v519
    %s521 = sld [smem:[#allocation2 + $0x30a]]
    %v522 = vstv %s521
    %v523 = vmul.f32 %v522, %v459
    %v524 = vadd.f32 %v520, %v523
    %s525 = sld [smem:[#allocation2 + $0x30b]]
    %v526 = vstv %s525
    %v527 = vmul.f32 %v526, %v477
    %v528 = vadd.f32 %v524, %v527
    %s529 = sld [smem:[#allocation4 + $0x302]]
    %v530 = vstv %s529
    %v531 = vadd.f32 %v528, %v530
    %s532 = sld [smem:[#allocation2 + $0x30c]]
    %v533 = vstv %s532
    %v534 = vmul.f32 %v533, %v423
    %s535 = sld [smem:[#allocation2 + $0x30d]]
    %v536 = vstv %s535
    %v537 = vmul.f32 %v536, %v441
    %v538 = vadd.f32 %v534, %v537
    %s539 = sld [smem:[#allocation2 + $0x30e]]
    %v540 = vstv %s539
    %v541 = vmul.f32 %v540, %v459
    %v542 = vadd.f32 %v538, %v541
    %s543 = sld [smem:[#allocation2 + $0x30f]]
    %v544 = vstv %s543
    %v545 = vmul.f32 %v544, %v477
    %v546 = vadd.f32 %v542, %v545
    %s547 = sld [smem:[#allocation4 + $0x303]]
    %v548 = vstv %s547
    %v549 = vadd.f32 %v546, %v548
    %s550 = sld [smem:[#allocation2 + $0x380]]
    %v551 = vstv %s550
    %v552 = vmul.f32 %v551, %v495
    %s553 = sld [smem:[#allocation2 + $0x381]]
    %v554 = vstv %s553
    %v555 = vmul.f32 %v554, %v513
    %v556 = vadd.f32 %v552, %v555
    %s557 = sld [smem:[#allocation2 + $0x382]]
    %v558 = vstv %s557
    %v559 = vmul.f32 %v558, %v531
    %v560 = vadd.f32 %v556, %v559
    %s561 = sld [smem:[#allocation2 + $0x383]]
    %v562 = vstv %s561
    %v563 = vmul.f32 %v562, %v549
    %v564 = vadd.f32 %v560, %v563
    %s565 = sld [smem:[#allocation4 + $0x380]]
    %v566 = vstv %s565
    %v567 = vadd.f32 %v564, %v566
    %s568 = sld [smem:[#allocation2 + $0x384]]
    %v569 = vstv %s568
    %v570 = vmul.f32 %v569, %v495
    %s571 = sld [smem:[#allocation2 + $0x385]]
    %v572 = vstv %s571
    %v573 = vmul.f32 %v572, %v513
    %v574 = vadd.f32 %v570, %v573
    %s575 = sld [smem:[#allocation2 + $0x386]]
    %v576 = vstv %s575
    %v577 = vmul.f32 %v576, %v531
    %v578 = vadd.f32 %v574, %v577
    %s579 = sld [smem:[#allocation2 + $0x387]]
    %v580 = vstv %s579
    %v581 = vmul.f32 %v580, %v549
    %v582 = vadd.f32 %v578, %v581
    %s583 = sld [smem:[#allocation4 + $0x381]]
    %v584 = vstv %s583
    %v585 = vadd.f32 %v582, %v584
    %s586 = sld [smem:[#allocation2 + $0x388]]
    %v587 = vstv %s586
    %v588 = vmul.f32 %v587, %v495
    %s589 = sld [smem:[#allocation2 + $0x389]]
    %v590 = vstv %s589
    %v591 = vmul.f32 %v590, %v513
    %v592 = vadd.f32 %v588, %v591
    %s593 = sld [smem:[#allocation2 + $0x38a]]
    %v594 = vstv %s593
    %v595 = vmul.f32 %v594, %v531
    %v596 = vadd.f32 %v592, %v595
    %s597 = sld [smem:[#allocation2 + $0x38b]]
    %v598 = vstv %s597
    %v599 = vmul.f32 %v598, %v549
    %v600 = vadd.f32 %v596, %v599
    %s601 = sld [smem:[#allocation4 + $0x382]]
    %v602 = vstv %s601
    %v603 = vadd.f32 %v600, %v602
    %s604 = sld [smem:[#allocation2 + $0x38c]]
    %v605 = vstv %s604
    %v606 = vmul.f32 %v605, %v495
    %s607 = sld [smem:[#allocation2 + $0x38d]]
    %v608 = vstv %s607
    %v609 = vmul.f32 %v608, %v513
    %v610 = vadd.f32 %v606, %v609
    %s611 = sld [smem:[#allocation2 + $0x38e]]
    %v612 = vstv %s611
    %v613 = vmul.f32 %v612, %v531
    %v614 = vadd.f32 %v610, %v613
    %s615 = sld [smem:[#allocation2 + $0x38f]]
    %v616 = vstv %s615
    %v617 = vmul.f32 %v616, %v549
    %v618 = vadd.f32 %v614, %v617
    %s619 = sld [smem:[#allocation4 + $0x383]]
    %v620 = vstv %s619
    %v621 = vadd.f32 %v618, %v620
    %v622 = vmax.f32 %v567, -1.0
    %v623 = vmin.f32 %v622, 1.0
    %624 = vst [vmem:[%s3] sm:$0xf] %v623
    %v625 = vmax.f32 %v585, -1.0
    %v626 = vmin.f32 %v625, 1.0
    %s627 = scalar_lea.vmem %s3, 4
    %628 = vst [vmem:[%s627] sm:$0xf] %v626
    %v629 = vmax.f32 %v603, -1.0
    %v630 = vmin.f32 %v629, 1.0
    %s631 = scalar_lea.vmem %s3, 8
    %632 = vst [vmem:[%s631] sm:$0xf] %v630
    %v633 = vmax.f32 %v621, -1.0
    %v634 = vmin.f32 %v633, 1.0
    %s635 = scalar_lea.vmem %s3, 12
    %636 = vst [vmem:[%s635] sm:$0xf] %v634
    // Predicated region
    $region22: #{_ddim_core_final.1} parent=1 // pred_check
      _
    $region23: #{_ddim_core_final.1} parent=1 // pred_check_branch
      %638 = sbr.rel (0) target = $region25
    $region24: #{_ddim_core_final.1} parent=1 // pred_region
      _
    $region25: #{_ddim_core_final.1} parent=1 // pred_fallthru
      _
    // Predicated region
    $region26: #{_ddim_core_final.1} parent=1 // pred_check
      _
    $region27: #{_ddim_core_final.1} parent=1 // pred_check_branch
      %640 = sbr.rel (0) target = $region29
    $region28: #{_ddim_core_final.1} parent=1 // pred_region
      _
    $region29: #{_ddim_core_final.1} parent=1 // pred_fallthru
      _
    %641 = vsyncpa [#allocation3], 1
    %642 = vsyncpa [#allocation5], 1

</llo_original>
